<compile_context>
chip_gen: v7x
topology: tpu7x:2x2x1
jax: 0.10.0
libtpu: 0.0.40
codegen_flags: <defaults>
</compile_context>

<pallas_src>
import functools

import jax
import jax.numpy as jnp
from jax.experimental import pallas as pl
from jax.experimental.pallas import tpu as pltpu

KERNEL_SIZE = 7
PAD = 3                       # Conv2d padding for kernel_size = 7
KK = KERNEL_SIZE * KERNEL_SIZE


def _spatial_attention_kernel(x_ref, w_ref, o_ref, sum_ref, max_ref, *, C, W):
    """One grid step: reduce one C chunk; on the last chunk do conv + sigmoid.

    x_ref:   (1, c_tile, HWp) VMEM  lane-dense input chunk (HWp = H*W padded to x128)
    w_ref:   (2*49,) f32      SMEM  flattened conv1 weights; avg taps pre-scaled by 1/C
    o_ref:   (1, 1, HWp)      VMEM  sigmoid(conv) output for this image
    sum_ref: (8, HWp) f32     VMEM  per-sublane partial channel sums
    max_ref: (8, HWp) f32     VMEM  per-sublane partial channel maxes
    """
    c_tile = x_ref.shape[1]
    hwp = x_ref.shape[2]
    c_idx = pl.program_id(1)
    last = pl.num_programs(1) - 1

    ragged = (C % c_tile) != 0          # static: last chunk has invalid channel rows
    rows_pad = (-c_tile) % 8            # static: pad sublanes up to a multiple of 8
    groups = (c_tile + rows_pad) // 8

    @pl.when(c_idx == 0)
    def _init():
        sum_ref[...] = jnp.zeros_like(sum_ref)
        max_ref[...] = jnp.full_like(max_ref, -jnp.inf)

    x = x_ref[0]                                            # (c_tile, HWp) native dtype
    if ragged:
        # Kill channel rows past C (the last block's DMA may read garbage there).
        ch = jax.lax.broadcasted_iota(jnp.int32, (c_tile, 1), 0) + c_idx * c_tile
        valid = ch < C
        x_s = jnp.where(valid, x, 0)
        x_m = jnp.where(valid, x, -jnp.inf)
    else:
        x_s = x
        x_m = x
    if rows_pad:
        x_s = jnp.pad(x_s, ((0, rows_pad), (0, 0)))
        x_m = jnp.pad(x_m, ((0, rows_pad), (0, 0)), constant_values=-jnp.inf)

    # (groups, 8, HWp): leading-axis reductions are plain cross-vreg VALU ops; no
    # per-step cross-sublane (XLU) reduce.
    x_s = x_s.reshape(groups, 8, hwp)
    x_m = x_m.reshape(groups, 8, hwp)
    sum_ref[...] += jnp.sum(x_s, axis=0, dtype=jnp.float32)
    max_ref[...] = jnp.maximum(max_ref[...], jnp.max(x_m, axis=0).astype(jnp.float32))

    @pl.when(c_idx == last)
    def _epilogue():
        # Single 8->1 cross-sublane reduce of the running partials.
        sum_row = jnp.sum(sum_ref[...], axis=0, keepdims=True)       # (1, HWp)
        max_row = jnp.max(max_ref[...], axis=0, keepdims=True)       # (1, HWp)
        # Stack avg/max maps so each tap slice + column mask serves both channels.
        maps = jnp.concatenate([sum_row, max_row], axis=0)           # (2, HWp)

        # Flat zero pad of 3*W + 3 on the lane axis: any tap whose source ROW is
        # outside the image reads zeros (from this pad or from the HW..HWp lane
        # pad of the zero-padded input), so only column wrap needs a mask.
        fpad = PAD * W + PAD
        maps_p = jnp.pad(maps, ((0, 0), (fpad, fpad)))               # (2, HWp + 2*fpad)

        # Column masks per horizontal offset dx (hoisted; traced once each).
        col = jax.lax.broadcasted_iota(jnp.int32, (1, hwp), 1) % W
        col_ok = {}
        for dx in range(-PAD, PAD + 1):
            if dx < 0:
                col_ok[dx] = col >= -dx
            elif dx > 0:
                col_ok[dx] = col < (W - dx)

        row0 = jax.lax.broadcasted_iota(jnp.int32, (2, 1), 0) == 0   # avg-row selector

        acc = jnp.zeros((2, hwp), jnp.float32)
        for dy in range(-PAD, PAD + 1):
            for dx in range(-PAD, PAD + 1):
                k = (dy + PAD) * KERNEL_SIZE + (dx + PAD)
                off = fpad + dy * W + dx
                # (2, 1) weight column: [w_avg_tap (already /C), w_max_tap].
                wcol = jnp.where(row0, w_ref[k], w_ref[KK + k])
                tap = maps_p[:, off:off + hwp]                       # (2, HWp)
                if dx != 0:
                    tap = jnp.where(col_ok[dx], tap, 0.0)
                acc = acc + wcol * tap

        y = jax.nn.sigmoid(jnp.sum(acc, axis=0, keepdims=True))      # (1, HWp)
        o_ref[...] = y[None].astype(o_ref.dtype)


def _pick_c_tile(C, hwp, itemsize, budget_bytes, sub):
    """Largest channel tile whose block fits the per-buffer VMEM budget.

    Prefers (a) all of C if it fits, then (b) the largest divisor of C that is a
    multiple of the dtype's sublane granularity `sub`, else (c) a capped
    non-divisor tile (the kernel masks the ragged tail), so the block can never
    blow past the budget on chips with small VMEM (v7x: 64 MiB physical).
    """
    if C * hwp * itemsize <= budget_bytes:
        return C
    best = 0
    for d in range(sub, C, sub):
        if C % d == 0 and d * hwp * itemsize <= budget_bytes:
            best = d
    if best:
        return best
    cap = (budget_bytes // (hwp * itemsize)) // sub * sub
    return int(min(max(cap, sub), C))


def spatial_attention(x, conv_weight, *, c_tile=None, budget_bytes=8 << 20,
                      input_buffers=2):
    """x: (N, C, H, W) float; conv_weight: (1, 2, 7, 7). Returns (N, 1, H, W)."""
    N, C, H, W = x.shape
    HW = H * W
    hwp = ((HW + 127) // 128) * 128                        # lane-dense last dim
    itemsize = jnp.dtype(x.dtype).itemsize
    sub = max(8, 32 // itemsize)                           # 8 f32 / 16 bf16 / 32 int8
    if c_tile is None:
        c_tile = _pick_c_tile(C, hwp, itemsize, budget_bytes, sub)
    num_c = -(-C // c_tile)                                # cdiv; ragged tail masked

    x_flat = x.reshape(N, C, HW)                           # free: NCHW is contiguous
    if hwp != HW:
        x_flat = jnp.pad(x_flat, ((0, 0), (0, 0), (0, hwp - HW)))

    # Flatten weights (avg taps then max taps); fold 1/C into the avg taps so the
    # epilogue reads the raw channel sum directly.
    w_flat = conv_weight.astype(jnp.float32).reshape(2 * KK)
    w_flat = jnp.concatenate([w_flat[:KK] * (1.0 / C), w_flat[KK:]])

    kernel = functools.partial(_spatial_attention_kernel, C=C, W=W)

    in_extra = {} if input_buffers == 2 else {"pipeline_mode": pl.Buffered(input_buffers)}

    # Size the scoped-VMEM limit to what we actually use (well inside even v7x's
    # 64 MiB physical VMEM) rather than a blanket number.
    fpad = PAD * W + PAD
    vmem_limit = (input_buffers * c_tile * hwp * itemsize   # pipelined input
                  + 2 * hwp * itemsize                      # pipelined output
                  + 2 * 8 * hwp * 4                         # sum/max scratch
                  + 8 * (hwp + 2 * fpad) * 4                # epilogue temporaries
                  + (4 << 20))                              # headroom
    vmem_limit = int(min(max(vmem_limit, 16 << 20), 64 << 20))

    out_flat = pl.pallas_call(
        kernel,
        out_shape=jax.ShapeDtypeStruct((N, 1, hwp), x.dtype),
        grid_spec=pltpu.PrefetchScalarGridSpec(
            num_scalar_prefetch=0,
            grid=(N, num_c),
            in_specs=[
                # lane-dense input chunk, pipelined over the C axis
                pl.BlockSpec((1, c_tile, hwp), lambda n, c: (n, c, 0), **in_extra),
                # 98 conv weights as scalars in SMEM
                pl.BlockSpec(memory_space=pltpu.MemorySpace.SMEM),
            ],
            # same output block across the C axis (accumulator pattern)
            out_specs=pl.BlockSpec((1, 1, hwp), lambda n, c: (n, 0, 0)),
            scratch_shapes=[
                pltpu.VMEM((8, hwp), jnp.float32),          # running sum partials
                pltpu.VMEM((8, hwp), jnp.float32),          # running max partials
            ],
        ),
        compiler_params=pltpu.CompilerParams(
            dimension_semantics=("parallel", "arbitrary"),
            vmem_limit_bytes=vmem_limit,
        ),
    )(x_flat, w_flat)

    return out_flat[:, :, :HW].reshape(N, 1, H, W)


def spatial_attention_ref(x, conv_weight):
    """Pure-JAX reference matching the PyTorch forward."""
    avg_out = jnp.mean(x, axis=1, keepdims=True)
    max_out = jnp.max(x, axis=1, keepdims=True)
    cat = jnp.concatenate([avg_out, max_out], axis=1)      # (N, 2, H, W)
    y = jax.lax.conv_general_dilated(
        cat, conv_weight,
        window_strides=(1, 1),
        padding=((PAD, PAD), (PAD, PAD)),
        dimension_numbers=("NCHW", "OIHW", "NCHW"),
    )
    return jax.nn.sigmoid(y)


if __name__ == "__main__":
    key = jax.random.PRNGKey(0)
    kx, kw, kx2 = jax.random.split(key, 3)

    # Spec-sized smoke test: N=2, C=4, 16x16 (HW already a multiple of 128).
    N, C, H, W = 2, 4, 16, 16
    x = jax.random.normal(kx, (N, C, H, W), dtype=jnp.float32)

    # Deterministic synthetic conv1 weight: (out=1, in=2, 7, 7), no bias.
    fan_in = 2 * KERNEL_SIZE * KERNEL_SIZE
    bound = 1.0 / (fan_in ** 0.5)
    conv_weight = jax.random.uniform(
        kw, (1, 2, KERNEL_SIZE, KERNEL_SIZE),
        minval=-bound, maxval=bound, dtype=jnp.float32)

    out = jax.block_until_ready(spatial_attention(x, conv_weight))
    ref = spatial_attention_ref(x, conv_weight)
    assert out.shape == (N, 1, H, W)
    assert jnp.allclose(out, ref, atol=1e-5, rtol=1e-5), "mismatch vs reference (smoke)"

    # Second tiny config exercising the tiled / ragged-C / lane-padded-HW paths
    # (C=24 with c_tile=16 -> 2 grid steps, masked tail; 8x8 -> HW=64 padded to 128).
    N2, C2, H2, W2 = 1, 24, 8, 8
    x2 = jax.random.normal(kx2, (N2, C2, H2, W2), dtype=jnp.float32)
    out2 = jax.block_until_ready(spatial_attention(x2, conv_weight, c_tile=16))
    ref2 = spatial_attention_ref(x2, conv_weight)
    assert out2.shape == (N2, 1, H2, W2)
    assert jnp.allclose(out2, ref2, atol=1e-5, rtol=1e-5), "mismatch vs reference (tiled)"

    print("KERNEL_OK")
</pallas_src>

<mosaic_0001>
module attributes {stable_mosaic.version = 11 : i64} {
  func.func @_spatial_attention_kernel(%arg0: i32, %arg1: i32, %arg2: memref<1x4x256xf32, #tpu.memory_space<vmem>>, %arg3: memref<98xf32, #tpu.memory_space<smem>>, %arg4: memref<1x1x256xf32, #tpu.memory_space<vmem>>, %arg5: memref<8x256xf32, #tpu.memory_space<vmem>>, %arg6: memref<8x256xf32, #tpu.memory_space<vmem>>) attributes {dimension_semantics = [#tpu.dimension_semantics<parallel>, #tpu.dimension_semantics<arbitrary>], iteration_bounds = array<i64: 2, 1>, scalar_prefetch = 0 : i64, scratch_operands = 2 : i64, tpu.core_type = #tpu.core_type<tc>, window_params = [{transform_indices = @transform_0, window_bounds = array<i64: 1, 4, 256>}, {transform_indices = @transform_1, window_bounds = array<i64: 98>}, {transform_indices = @transform_2, window_bounds = array<i64: 1, 1, 256>}]} {
    %c0_i32 = arith.constant 0 : i32
    %0 = arith.cmpi eq, %arg1, %c0_i32 : i32
    %1 = arith.extui %0 : i1 to i32
    %c0_i32_0 = arith.constant 0 : i32
    %2 = arith.cmpi ne, %1, %c0_i32_0 : i32
    scf.if %2 {
      %cst_16 = arith.constant 0.000000e+00 : f32
      %23 = vector.broadcast %cst_16 : f32 to vector<8x256xf32>
      %c0_17 = arith.constant 0 : index
      %c0_18 = arith.constant 0 : index
      %24 = vector.load %arg5[%c0_17, %c0_18] : memref<8x256xf32, #tpu.memory_space<vmem>>, vector<8x256xf32>
      tpu.vector_store %arg5[%c0_17, %c0_18], %23 {strides = array<i32>} : memref<8x256xf32, #tpu.memory_space<vmem>>, vector<8x256xf32>,
      %cst_19 = arith.constant 0xFF800000 : f32
      %25 = vector.broadcast %cst_19 : f32 to vector<8x256xf32>
      %c0_20 = arith.constant 0 : index
      %c0_21 = arith.constant 0 : index
      %26 = vector.load %arg6[%c0_20, %c0_21] : memref<8x256xf32, #tpu.memory_space<vmem>>, vector<8x256xf32>
      tpu.vector_store %arg6[%c0_20, %c0_21], %25 {strides = array<i32>} : memref<8x256xf32, #tpu.memory_space<vmem>>, vector<8x256xf32>,
    } else {
    }
    %c0 = arith.constant 0 : index
    %c0_1 = arith.constant 0 : index
    %c0_2 = arith.constant 0 : index
    %3 = vector.load %arg2[%c0, %c0_1, %c0_2] : memref<1x4x256xf32, #tpu.memory_space<vmem>>, vector<1x4x256xf32>
    %4 = vector.shape_cast %3 : vector<1x4x256xf32> to vector<4x256xf32>
    %c0_i32_3 = arith.constant 0 : i32
    %5 = arith.sitofp %c0_i32_3 : i32 to f32
    %6 = vector.broadcast %5 : f32 to vector<4x256xf32>
    %7 = tpu.concatenate %4, %6 in 0 : vector<4x256xf32>, vector<4x256xf32> -> vector<8x256xf32>
    %cst = arith.constant 0xFF800000 : f32
    %8 = vector.broadcast %cst : f32 to vector<4x256xf32>
    %9 = tpu.concatenate %4, %8 in 0 : vector<4x256xf32>, vector<4x256xf32> -> vector<8x256xf32>
    %10 = vector.shape_cast %7 : vector<8x256xf32> to vector<1x8x256xf32>
    %11 = vector.shape_cast %9 : vector<8x256xf32> to vector<1x8x256xf32>
    %c0_4 = arith.constant 0 : index
    %c0_5 = arith.constant 0 : index
    %12 = vector.load %arg5[%c0_4, %c0_5] : memref<8x256xf32, #tpu.memory_space<vmem>>, vector<8x256xf32>
    %cst_6 = arith.constant dense<0.000000e+00> : vector<8x256xf32>
    %13 = vector.multi_reduction <add>, %10, %cst_6 [0] : vector<1x8x256xf32> to vector<8x256xf32>
    %14 = arith.addf %12, %13 : vector<8x256xf32>
    %c0_7 = arith.constant 0 : index
    %c0_8 = arith.constant 0 : index
    %15 = vector.load %arg5[%c0_7, %c0_8] : memref<8x256xf32, #tpu.memory_space<vmem>>, vector<8x256xf32>
    tpu.vector_store %arg5[%c0_7, %c0_8], %14 {strides = array<i32>} : memref<8x256xf32, #tpu.memory_space<vmem>>, vector<8x256xf32>,
    %c0_9 = arith.constant 0 : index
    %c0_10 = arith.constant 0 : index
    %16 = vector.load %arg6[%c0_9, %c0_10] : memref<8x256xf32, #tpu.memory_space<vmem>>, vector<8x256xf32>
    %cst_11 = arith.constant dense<0xFF800000> : vector<8x256xf32>
    %17 = vector.multi_reduction <maximumf>, %11, %cst_11 [0] : vector<1x8x256xf32> to vector<8x256xf32>
    %18 = arith.maximumf %16, %17 : vector<8x256xf32>
    %c0_12 = arith.constant 0 : index
    %c0_13 = arith.constant 0 : index
    %19 = vector.load %arg6[%c0_12, %c0_13] : memref<8x256xf32, #tpu.memory_space<vmem>>, vector<8x256xf32>
    tpu.vector_store %arg6[%c0_12, %c0_13], %18 {strides = array<i32>} : memref<8x256xf32, #tpu.memory_space<vmem>>, vector<8x256xf32>,
    %c0_i32_14 = arith.constant 0 : i32
    %20 = arith.cmpi eq, %arg1, %c0_i32_14 : i32
    %21 = arith.extui %20 : i1 to i32
    %c0_i32_15 = arith.constant 0 : i32
    %22 = arith.cmpi ne, %21, %c0_i32_15 : i32
    scf.if %22 {
      %c0_16 = arith.constant 0 : index
      %c0_17 = arith.constant 0 : index
      %23 = vector.load %arg5[%c0_16, %c0_17] : memref<8x256xf32, #tpu.memory_space<vmem>>, vector<8x256xf32>
      %cst_18 = arith.constant dense<0.000000e+00> : vector<256xf32>
      %24 = vector.multi_reduction <add>, %23, %cst_18 [0] : vector<8x256xf32> to vector<256xf32>
      %25 = vector.shape_cast %24 : vector<256xf32> to vector<1x256xf32>
      %c0_19 = arith.constant 0 : index
      %c0_20 = arith.constant 0 : index
      %26 = vector.load %arg6[%c0_19, %c0_20] : memref<8x256xf32, #tpu.memory_space<vmem>>, vector<8x256xf32>
      %cst_21 = arith.constant dense<0xFF800000> : vector<256xf32>
      %27 = vector.multi_reduction <maximumf>, %26, %cst_21 [0] : vector<8x256xf32> to vector<256xf32>
      %28 = vector.shape_cast %27 : vector<256xf32> to vector<1x256xf32>
      %29 = tpu.concatenate %25, %28 in 0 : vector<1x256xf32>, vector<1x256xf32> -> vector<2x256xf32>
      %c0_i32_22 = arith.constant 0 : i32
      %30 = arith.sitofp %c0_i32_22 : i32 to f32
      %31 = vector.broadcast %30 : f32 to vector<2x51xf32>
      %32 = tpu.concatenate %31, %29 in 1 : vector<2x51xf32>, vector<2x256xf32> -> vector<2x307xf32>
      %33 = vector.broadcast %30 : f32 to vector<2x51xf32>
      %34 = tpu.concatenate %32, %33 in 1 : vector<2x307xf32>, vector<2x51xf32> -> vector<2x358xf32>
      %35 = tpu.iota {dimensions = array<i32: 1>} : vector<1x256xi32>
      %c16_i32 = arith.constant 16 : i32
      %c0_i32_23 = arith.constant 0 : i32
      %36 = arith.cmpi eq, %c16_i32, %c0_i32_23 : i32
      %c1_i32 = arith.constant 1 : i32
      %37 = arith.select %36, %c1_i32, %c16_i32 : i32
      %38 = vector.broadcast %37 : i32 to vector<1x256xi32>
      %39 = arith.remsi %35, %38 : vector<1x256xi32>
      %c0_i32_24 = arith.constant 0 : i32
      %40 = vector.broadcast %c0_i32_24 : i32 to vector<1x256xi32>
      %41 = arith.cmpi ne, %39, %40 : vector<1x256xi32>
      %c0_i32_25 = arith.constant 0 : i32
      %42 = vector.broadcast %c0_i32_25 : i32 to vector<1x256xi32>
      %43 = arith.cmpi slt, %39, %42 : vector<1x256xi32>
      %c0_i32_26 = arith.constant 0 : i32
      %44 = arith.cmpi slt, %37, %c0_i32_26 : i32
      %45 = vector.broadcast %44 : i1 to vector<1x256xi1>
      %46 = vector.broadcast %45 : vector<1x256xi1> to vector<1x256xi1>
      %47 = arith.xori %43, %46 : vector<1x256xi1>
      %48 = arith.andi %47, %41 : vector<1x256xi1>
      %49 = vector.broadcast %37 : i32 to vector<1x256xi32>
      %50 = arith.addi %39, %49 : vector<1x256xi32>
      %51 = arith.select %48, %50, %39 : vector<1x256xi1>, vector<1x256xi32>
      %c3_i32 = arith.constant 3 : i32
      %52 = vector.broadcast %c3_i32 : i32 to vector<1x256xi32>
      %53 = arith.cmpi sge, %51, %52 : vector<1x256xi32>
      %c2_i32 = arith.constant 2 : i32
      %54 = vector.broadcast %c2_i32 : i32 to vector<1x256xi32>
      %55 = arith.cmpi sge, %51, %54 : vector<1x256xi32>
      %c1_i32_27 = arith.constant 1 : i32
      %56 = vector.broadcast %c1_i32_27 : i32 to vector<1x256xi32>
      %57 = arith.cmpi sge, %51, %56 : vector<1x256xi32>
      %c15_i32 = arith.constant 15 : i32
      %58 = vector.broadcast %c15_i32 : i32 to vector<1x256xi32>
      %59 = arith.cmpi slt, %51, %58 : vector<1x256xi32>
      %c14_i32 = arith.constant 14 : i32
      %60 = vector.broadcast %c14_i32 : i32 to vector<1x256xi32>
      %61 = arith.cmpi slt, %51, %60 : vector<1x256xi32>
      %c13_i32 = arith.constant 13 : i32
      %62 = vector.broadcast %c13_i32 : i32 to vector<1x256xi32>
      %63 = arith.cmpi slt, %51, %62 : vector<1x256xi32>
      %64 = tpu.iota {dimensions = array<i32: 0>} : vector<2x1xi32>
      %c0_i32_28 = arith.constant 0 : i32
      %65 = vector.broadcast %c0_i32_28 : i32 to vector<2x1xi32>
      %66 = arith.cmpi eq, %64, %65 : vector<2x1xi32>
      %cst_29 = arith.constant 0.000000e+00 : f32
      %67 = vector.broadcast %cst_29 : f32 to vector<2x256xf32>
      %c0_30 = arith.constant 0 : index
      %68 = memref.load %arg3[%c0_30] : memref<98xf32, #tpu.memory_space<smem>>
      %c49 = arith.constant 49 : index
      %69 = memref.load %arg3[%c49] : memref<98xf32, #tpu.memory_space<smem>>
      %70 = vector.broadcast %68 : f32 to vector<2x1xf32>
      %71 = vector.broadcast %69 : f32 to vector<2x1xf32>
      %72 = arith.select %66, %70, %71 : vector<2x1xi1>, vector<2x1xf32>
      %73 = vector.extract_strided_slice %34 {offsets = [0, 0], sizes = [2, 256], strides = [1, 1]} : vector<2x358xf32> to vector<2x256xf32>
      %cst_31 = arith.constant 0.000000e+00 : f32
      %74 = vector.shape_cast %53 : vector<1x256xi1> to vector<1x256xi1>
      %75 = vector.broadcast %74 : vector<1x256xi1> to vector<2x256xi1>
      %76 = vector.broadcast %cst_31 : f32 to vector<2x256xf32>
      %77 = arith.select %75, %73, %76 : vector<2x256xi1>, vector<2x256xf32>
      %78 = vector.broadcast %72 : vector<2x1xf32> to vector<2x256xf32>
      %79 = arith.mulf %78, %77 : vector<2x256xf32>
      %80 = arith.addf %67, %79 : vector<2x256xf32>
      %c1 = arith.constant 1 : index
      %81 = memref.load %arg3[%c1] : memref<98xf32, #tpu.memory_space<smem>>
      %c50 = arith.constant 50 : index
      %82 = memref.load %arg3[%c50] : memref<98xf32, #tpu.memory_space<smem>>
      %83 = vector.broadcast %81 : f32 to vector<2x1xf32>
      %84 = vector.broadcast %82 : f32 to vector<2x1xf32>
      %85 = arith.select %66, %83, %84 : vector<2x1xi1>, vector<2x1xf32>
      %86 = vector.extract_strided_slice %34 {offsets = [0, 1], sizes = [2, 256], strides = [1, 1]} : vector<2x358xf32> to vector<2x256xf32>
      %cst_32 = arith.constant 0.000000e+00 : f32
      %87 = vector.shape_cast %55 : vector<1x256xi1> to vector<1x256xi1>
      %88 = vector.broadcast %87 : vector<1x256xi1> to vector<2x256xi1>
      %89 = vector.broadcast %cst_32 : f32 to vector<2x256xf32>
      %90 = arith.select %88, %86, %89 : vector<2x256xi1>, vector<2x256xf32>
      %91 = vector.broadcast %85 : vector<2x1xf32> to vector<2x256xf32>
      %92 = arith.mulf %91, %90 : vector<2x256xf32>
      %93 = arith.addf %80, %92 : vector<2x256xf32>
      %c2 = arith.constant 2 : index
      %94 = memref.load %arg3[%c2] : memref<98xf32, #tpu.memory_space<smem>>
      %c51 = arith.constant 51 : index
      %95 = memref.load %arg3[%c51] : memref<98xf32, #tpu.memory_space<smem>>
      %96 = vector.broadcast %94 : f32 to vector<2x1xf32>
      %97 = vector.broadcast %95 : f32 to vector<2x1xf32>
      %98 = arith.select %66, %96, %97 : vector<2x1xi1>, vector<2x1xf32>
      %99 = vector.extract_strided_slice %34 {offsets = [0, 2], sizes = [2, 256], strides = [1, 1]} : vector<2x358xf32> to vector<2x256xf32>
      %cst_33 = arith.constant 0.000000e+00 : f32
      %100 = vector.shape_cast %57 : vector<1x256xi1> to vector<1x256xi1>
      %101 = vector.broadcast %100 : vector<1x256xi1> to vector<2x256xi1>
      %102 = vector.broadcast %cst_33 : f32 to vector<2x256xf32>
      %103 = arith.select %101, %99, %102 : vector<2x256xi1>, vector<2x256xf32>
      %104 = vector.broadcast %98 : vector<2x1xf32> to vector<2x256xf32>
      %105 = arith.mulf %104, %103 : vector<2x256xf32>
      %106 = arith.addf %93, %105 : vector<2x256xf32>
      %c3 = arith.constant 3 : index
      %107 = memref.load %arg3[%c3] : memref<98xf32, #tpu.memory_space<smem>>
      %c52 = arith.constant 52 : index
      %108 = memref.load %arg3[%c52] : memref<98xf32, #tpu.memory_space<smem>>
      %109 = vector.broadcast %107 : f32 to vector<2x1xf32>
      %110 = vector.broadcast %108 : f32 to vector<2x1xf32>
      %111 = arith.select %66, %109, %110 : vector<2x1xi1>, vector<2x1xf32>
      %112 = vector.extract_strided_slice %34 {offsets = [0, 3], sizes = [2, 256], strides = [1, 1]} : vector<2x358xf32> to vector<2x256xf32>
      %113 = vector.broadcast %111 : vector<2x1xf32> to vector<2x256xf32>
      %114 = arith.mulf %113, %112 : vector<2x256xf32>
      %115 = arith.addf %106, %114 : vector<2x256xf32>
      %c4 = arith.constant 4 : index
      %116 = memref.load %arg3[%c4] : memref<98xf32, #tpu.memory_space<smem>>
      %c53 = arith.constant 53 : index
      %117 = memref.load %arg3[%c53] : memref<98xf32, #tpu.memory_space<smem>>
      %118 = vector.broadcast %116 : f32 to vector<2x1xf32>
      %119 = vector.broadcast %117 : f32 to vector<2x1xf32>
      %120 = arith.select %66, %118, %119 : vector<2x1xi1>, vector<2x1xf32>
      %121 = vector.extract_strided_slice %34 {offsets = [0, 4], sizes = [2, 256], strides = [1, 1]} : vector<2x358xf32> to vector<2x256xf32>
      %cst_34 = arith.constant 0.000000e+00 : f32
      %122 = vector.shape_cast %59 : vector<1x256xi1> to vector<1x256xi1>
      %123 = vector.broadcast %122 : vector<1x256xi1> to vector<2x256xi1>
      %124 = vector.broadcast %cst_34 : f32 to vector<2x256xf32>
      %125 = arith.select %123, %121, %124 : vector<2x256xi1>, vector<2x256xf32>
      %126 = vector.broadcast %120 : vector<2x1xf32> to vector<2x256xf32>
      %127 = arith.mulf %126, %125 : vector<2x256xf32>
      %128 = arith.addf %115, %127 : vector<2x256xf32>
      %c5 = arith.constant 5 : index
      %129 = memref.load %arg3[%c5] : memref<98xf32, #tpu.memory_space<smem>>
      %c54 = arith.constant 54 : index
      %130 = memref.load %arg3[%c54] : memref<98xf32, #tpu.memory_space<smem>>
      %131 = vector.broadcast %129 : f32 to vector<2x1xf32>
      %132 = vector.broadcast %130 : f32 to vector<2x1xf32>
      %133 = arith.select %66, %131, %132 : vector<2x1xi1>, vector<2x1xf32>
      %134 = vector.extract_strided_slice %34 {offsets = [0, 5], sizes = [2, 256], strides = [1, 1]} : vector<2x358xf32> to vector<2x256xf32>
      %cst_35 = arith.constant 0.000000e+00 : f32
      %135 = vector.shape_cast %61 : vector<1x256xi1> to vector<1x256xi1>
      %136 = vector.broadcast %135 : vector<1x256xi1> to vector<2x256xi1>
      %137 = vector.broadcast %cst_35 : f32 to vector<2x256xf32>
      %138 = arith.select %136, %134, %137 : vector<2x256xi1>, vector<2x256xf32>
      %139 = vector.broadcast %133 : vector<2x1xf32> to vector<2x256xf32>
      %140 = arith.mulf %139, %138 : vector<2x256xf32>
      %141 = arith.addf %128, %140 : vector<2x256xf32>
      %c6 = arith.constant 6 : index
      %142 = memref.load %arg3[%c6] : memref<98xf32, #tpu.memory_space<smem>>
      %c55 = arith.constant 55 : index
      %143 = memref.load %arg3[%c55] : memref<98xf32, #tpu.memory_space<smem>>
      %144 = vector.broadcast %142 : f32 to vector<2x1xf32>
      %145 = vector.broadcast %143 : f32 to vector<2x1xf32>
      %146 = arith.select %66, %144, %145 : vector<2x1xi1>, vector<2x1xf32>
      %147 = vector.extract_strided_slice %34 {offsets = [0, 6], sizes = [2, 256], strides = [1, 1]} : vector<2x358xf32> to vector<2x256xf32>
      %cst_36 = arith.constant 0.000000e+00 : f32
      %148 = vector.shape_cast %63 : vector<1x256xi1> to vector<1x256xi1>
      %149 = vector.broadcast %148 : vector<1x256xi1> to vector<2x256xi1>
      %150 = vector.broadcast %cst_36 : f32 to vector<2x256xf32>
      %151 = arith.select %149, %147, %150 : vector<2x256xi1>, vector<2x256xf32>
      %152 = vector.broadcast %146 : vector<2x1xf32> to vector<2x256xf32>
      %153 = arith.mulf %152, %151 : vector<2x256xf32>
      %154 = arith.addf %141, %153 : vector<2x256xf32>
      %c7 = arith.constant 7 : index
      %155 = memref.load %arg3[%c7] : memref<98xf32, #tpu.memory_space<smem>>
      %c56 = arith.constant 56 : index
      %156 = memref.load %arg3[%c56] : memref<98xf32, #tpu.memory_space<smem>>
      %157 = vector.broadcast %155 : f32 to vector<2x1xf32>
      %158 = vector.broadcast %156 : f32 to vector<2x1xf32>
      %159 = arith.select %66, %157, %158 : vector<2x1xi1>, vector<2x1xf32>
      %160 = vector.extract_strided_slice %34 {offsets = [0, 16], sizes = [2, 256], strides = [1, 1]} : vector<2x358xf32> to vector<2x256xf32>
      %cst_37 = arith.constant 0.000000e+00 : f32
      %161 = vector.shape_cast %53 : vector<1x256xi1> to vector<1x256xi1>
      %162 = vector.broadcast %161 : vector<1x256xi1> to vector<2x256xi1>
      %163 = vector.broadcast %cst_37 : f32 to vector<2x256xf32>
      %164 = arith.select %162, %160, %163 : vector<2x256xi1>, vector<2x256xf32>
      %165 = vector.broadcast %159 : vector<2x1xf32> to vector<2x256xf32>
      %166 = arith.mulf %165, %164 : vector<2x256xf32>
      %167 = arith.addf %154, %166 : vector<2x256xf32>
      %c8 = arith.constant 8 : index
      %168 = memref.load %arg3[%c8] : memref<98xf32, #tpu.memory_space<smem>>
      %c57 = arith.constant 57 : index
      %169 = memref.load %arg3[%c57] : memref<98xf32, #tpu.memory_space<smem>>
      %170 = vector.broadcast %168 : f32 to vector<2x1xf32>
      %171 = vector.broadcast %169 : f32 to vector<2x1xf32>
      %172 = arith.select %66, %170, %171 : vector<2x1xi1>, vector<2x1xf32>
      %173 = vector.extract_strided_slice %34 {offsets = [0, 17], sizes = [2, 256], strides = [1, 1]} : vector<2x358xf32> to vector<2x256xf32>
      %cst_38 = arith.constant 0.000000e+00 : f32
      %174 = vector.shape_cast %55 : vector<1x256xi1> to vector<1x256xi1>
      %175 = vector.broadcast %174 : vector<1x256xi1> to vector<2x256xi1>
      %176 = vector.broadcast %cst_38 : f32 to vector<2x256xf32>
      %177 = arith.select %175, %173, %176 : vector<2x256xi1>, vector<2x256xf32>
      %178 = vector.broadcast %172 : vector<2x1xf32> to vector<2x256xf32>
      %179 = arith.mulf %178, %177 : vector<2x256xf32>
      %180 = arith.addf %167, %179 : vector<2x256xf32>
      %c9 = arith.constant 9 : index
      %181 = memref.load %arg3[%c9] : memref<98xf32, #tpu.memory_space<smem>>
      %c58 = arith.constant 58 : index
      %182 = memref.load %arg3[%c58] : memref<98xf32, #tpu.memory_space<smem>>
      %183 = vector.broadcast %181 : f32 to vector<2x1xf32>
      %184 = vector.broadcast %182 : f32 to vector<2x1xf32>
      %185 = arith.select %66, %183, %184 : vector<2x1xi1>, vector<2x1xf32>
      %186 = vector.extract_strided_slice %34 {offsets = [0, 18], sizes = [2, 256], strides = [1, 1]} : vector<2x358xf32> to vector<2x256xf32>
      %cst_39 = arith.constant 0.000000e+00 : f32
      %187 = vector.shape_cast %57 : vector<1x256xi1> to vector<1x256xi1>
      %188 = vector.broadcast %187 : vector<1x256xi1> to vector<2x256xi1>
      %189 = vector.broadcast %cst_39 : f32 to vector<2x256xf32>
      %190 = arith.select %188, %186, %189 : vector<2x256xi1>, vector<2x256xf32>
      %191 = vector.broadcast %185 : vector<2x1xf32> to vector<2x256xf32>
      %192 = arith.mulf %191, %190 : vector<2x256xf32>
      %193 = arith.addf %180, %192 : vector<2x256xf32>
      %c10 = arith.constant 10 : index
      %194 = memref.load %arg3[%c10] : memref<98xf32, #tpu.memory_space<smem>>
      %c59 = arith.constant 59 : index
      %195 = memref.load %arg3[%c59] : memref<98xf32, #tpu.memory_space<smem>>
      %196 = vector.broadcast %194 : f32 to vector<2x1xf32>
      %197 = vector.broadcast %195 : f32 to vector<2x1xf32>
      %198 = arith.select %66, %196, %197 : vector<2x1xi1>, vector<2x1xf32>
      %199 = vector.extract_strided_slice %34 {offsets = [0, 19], sizes = [2, 256], strides = [1, 1]} : vector<2x358xf32> to vector<2x256xf32>
      %200 = vector.broadcast %198 : vector<2x1xf32> to vector<2x256xf32>
      %201 = arith.mulf %200, %199 : vector<2x256xf32>
      %202 = arith.addf %193, %201 : vector<2x256xf32>
      %c11 = arith.constant 11 : index
      %203 = memref.load %arg3[%c11] : memref<98xf32, #tpu.memory_space<smem>>
      %c60 = arith.constant 60 : index
      %204 = memref.load %arg3[%c60] : memref<98xf32, #tpu.memory_space<smem>>
      %205 = vector.broadcast %203 : f32 to vector<2x1xf32>
      %206 = vector.broadcast %204 : f32 to vector<2x1xf32>
      %207 = arith.select %66, %205, %206 : vector<2x1xi1>, vector<2x1xf32>
      %208 = vector.extract_strided_slice %34 {offsets = [0, 20], sizes = [2, 256], strides = [1, 1]} : vector<2x358xf32> to vector<2x256xf32>
      %cst_40 = arith.constant 0.000000e+00 : f32
      %209 = vector.shape_cast %59 : vector<1x256xi1> to vector<1x256xi1>
      %210 = vector.broadcast %209 : vector<1x256xi1> to vector<2x256xi1>
      %211 = vector.broadcast %cst_40 : f32 to vector<2x256xf32>
      %212 = arith.select %210, %208, %211 : vector<2x256xi1>, vector<2x256xf32>
      %213 = vector.broadcast %207 : vector<2x1xf32> to vector<2x256xf32>
      %214 = arith.mulf %213, %212 : vector<2x256xf32>
      %215 = arith.addf %202, %214 : vector<2x256xf32>
      %c12 = arith.constant 12 : index
      %216 = memref.load %arg3[%c12] : memref<98xf32, #tpu.memory_space<smem>>
      %c61 = arith.constant 61 : index
      %217 = memref.load %arg3[%c61] : memref<98xf32, #tpu.memory_space<smem>>
      %218 = vector.broadcast %216 : f32 to vector<2x1xf32>
      %219 = vector.broadcast %217 : f32 to vector<2x1xf32>
      %220 = arith.select %66, %218, %219 : vector<2x1xi1>, vector<2x1xf32>
      %221 = vector.extract_strided_slice %34 {offsets = [0, 21], sizes = [2, 256], strides = [1, 1]} : vector<2x358xf32> to vector<2x256xf32>
      %cst_41 = arith.constant 0.000000e+00 : f32
      %222 = vector.shape_cast %61 : vector<1x256xi1> to vector<1x256xi1>
      %223 = vector.broadcast %222 : vector<1x256xi1> to vector<2x256xi1>
      %224 = vector.broadcast %cst_41 : f32 to vector<2x256xf32>
      %225 = arith.select %223, %221, %224 : vector<2x256xi1>, vector<2x256xf32>
      %226 = vector.broadcast %220 : vector<2x1xf32> to vector<2x256xf32>
      %227 = arith.mulf %226, %225 : vector<2x256xf32>
      %228 = arith.addf %215, %227 : vector<2x256xf32>
      %c13 = arith.constant 13 : index
      %229 = memref.load %arg3[%c13] : memref<98xf32, #tpu.memory_space<smem>>
      %c62 = arith.constant 62 : index
      %230 = memref.load %arg3[%c62] : memref<98xf32, #tpu.memory_space<smem>>
      %231 = vector.broadcast %229 : f32 to vector<2x1xf32>
      %232 = vector.broadcast %230 : f32 to vector<2x1xf32>
      %233 = arith.select %66, %231, %232 : vector<2x1xi1>, vector<2x1xf32>
      %234 = vector.extract_strided_slice %34 {offsets = [0, 22], sizes = [2, 256], strides = [1, 1]} : vector<2x358xf32> to vector<2x256xf32>
      %cst_42 = arith.constant 0.000000e+00 : f32
      %235 = vector.shape_cast %63 : vector<1x256xi1> to vector<1x256xi1>
      %236 = vector.broadcast %235 : vector<1x256xi1> to vector<2x256xi1>
      %237 = vector.broadcast %cst_42 : f32 to vector<2x256xf32>
      %238 = arith.select %236, %234, %237 : vector<2x256xi1>, vector<2x256xf32>
      %239 = vector.broadcast %233 : vector<2x1xf32> to vector<2x256xf32>
      %240 = arith.mulf %239, %238 : vector<2x256xf32>
      %241 = arith.addf %228, %240 : vector<2x256xf32>
      %c14 = arith.constant 14 : index
      %242 = memref.load %arg3[%c14] : memref<98xf32, #tpu.memory_space<smem>>
      %c63 = arith.constant 63 : index
      %243 = memref.load %arg3[%c63] : memref<98xf32, #tpu.memory_space<smem>>
      %244 = vector.broadcast %242 : f32 to vector<2x1xf32>
      %245 = vector.broadcast %243 : f32 to vector<2x1xf32>
      %246 = arith.select %66, %244, %245 : vector<2x1xi1>, vector<2x1xf32>
      %247 = vector.extract_strided_slice %34 {offsets = [0, 32], sizes = [2, 256], strides = [1, 1]} : vector<2x358xf32> to vector<2x256xf32>
      %cst_43 = arith.constant 0.000000e+00 : f32
      %248 = vector.shape_cast %53 : vector<1x256xi1> to vector<1x256xi1>
      %249 = vector.broadcast %248 : vector<1x256xi1> to vector<2x256xi1>
      %250 = vector.broadcast %cst_43 : f32 to vector<2x256xf32>
      %251 = arith.select %249, %247, %250 : vector<2x256xi1>, vector<2x256xf32>
      %252 = vector.broadcast %246 : vector<2x1xf32> to vector<2x256xf32>
      %253 = arith.mulf %252, %251 : vector<2x256xf32>
      %254 = arith.addf %241, %253 : vector<2x256xf32>
      %c15 = arith.constant 15 : index
      %255 = memref.load %arg3[%c15] : memref<98xf32, #tpu.memory_space<smem>>
      %c64 = arith.constant 64 : index
      %256 = memref.load %arg3[%c64] : memref<98xf32, #tpu.memory_space<smem>>
      %257 = vector.broadcast %255 : f32 to vector<2x1xf32>
      %258 = vector.broadcast %256 : f32 to vector<2x1xf32>
      %259 = arith.select %66, %257, %258 : vector<2x1xi1>, vector<2x1xf32>
      %260 = vector.extract_strided_slice %34 {offsets = [0, 33], sizes = [2, 256], strides = [1, 1]} : vector<2x358xf32> to vector<2x256xf32>
      %cst_44 = arith.constant 0.000000e+00 : f32
      %261 = vector.shape_cast %55 : vector<1x256xi1> to vector<1x256xi1>
      %262 = vector.broadcast %261 : vector<1x256xi1> to vector<2x256xi1>
      %263 = vector.broadcast %cst_44 : f32 to vector<2x256xf32>
      %264 = arith.select %262, %260, %263 : vector<2x256xi1>, vector<2x256xf32>
      %265 = vector.broadcast %259 : vector<2x1xf32> to vector<2x256xf32>
      %266 = arith.mulf %265, %264 : vector<2x256xf32>
      %267 = arith.addf %254, %266 : vector<2x256xf32>
      %c16 = arith.constant 16 : index
      %268 = memref.load %arg3[%c16] : memref<98xf32, #tpu.memory_space<smem>>
      %c65 = arith.constant 65 : index
      %269 = memref.load %arg3[%c65] : memref<98xf32, #tpu.memory_space<smem>>
      %270 = vector.broadcast %268 : f32 to vector<2x1xf32>
      %271 = vector.broadcast %269 : f32 to vector<2x1xf32>
      %272 = arith.select %66, %270, %271 : vector<2x1xi1>, vector<2x1xf32>
      %273 = vector.extract_strided_slice %34 {offsets = [0, 34], sizes = [2, 256], strides = [1, 1]} : vector<2x358xf32> to vector<2x256xf32>
      %cst_45 = arith.constant 0.000000e+00 : f32
      %274 = vector.shape_cast %57 : vector<1x256xi1> to vector<1x256xi1>
      %275 = vector.broadcast %274 : vector<1x256xi1> to vector<2x256xi1>
      %276 = vector.broadcast %cst_45 : f32 to vector<2x256xf32>
      %277 = arith.select %275, %273, %276 : vector<2x256xi1>, vector<2x256xf32>
      %278 = vector.broadcast %272 : vector<2x1xf32> to vector<2x256xf32>
      %279 = arith.mulf %278, %277 : vector<2x256xf32>
      %280 = arith.addf %267, %279 : vector<2x256xf32>
      %c17 = arith.constant 17 : index
      %281 = memref.load %arg3[%c17] : memref<98xf32, #tpu.memory_space<smem>>
      %c66 = arith.constant 66 : index
      %282 = memref.load %arg3[%c66] : memref<98xf32, #tpu.memory_space<smem>>
      %283 = vector.broadcast %281 : f32 to vector<2x1xf32>
      %284 = vector.broadcast %282 : f32 to vector<2x1xf32>
      %285 = arith.select %66, %283, %284 : vector<2x1xi1>, vector<2x1xf32>
      %286 = vector.extract_strided_slice %34 {offsets = [0, 35], sizes = [2, 256], strides = [1, 1]} : vector<2x358xf32> to vector<2x256xf32>
      %287 = vector.broadcast %285 : vector<2x1xf32> to vector<2x256xf32>
      %288 = arith.mulf %287, %286 : vector<2x256xf32>
      %289 = arith.addf %280, %288 : vector<2x256xf32>
      %c18 = arith.constant 18 : index
      %290 = memref.load %arg3[%c18] : memref<98xf32, #tpu.memory_space<smem>>
      %c67 = arith.constant 67 : index
      %291 = memref.load %arg3[%c67] : memref<98xf32, #tpu.memory_space<smem>>
      %292 = vector.broadcast %290 : f32 to vector<2x1xf32>
      %293 = vector.broadcast %291 : f32 to vector<2x1xf32>
      %294 = arith.select %66, %292, %293 : vector<2x1xi1>, vector<2x1xf32>
      %295 = vector.extract_strided_slice %34 {offsets = [0, 36], sizes = [2, 256], strides = [1, 1]} : vector<2x358xf32> to vector<2x256xf32>
      %cst_46 = arith.constant 0.000000e+00 : f32
      %296 = vector.shape_cast %59 : vector<1x256xi1> to vector<1x256xi1>
      %297 = vector.broadcast %296 : vector<1x256xi1> to vector<2x256xi1>
      %298 = vector.broadcast %cst_46 : f32 to vector<2x256xf32>
      %299 = arith.select %297, %295, %298 : vector<2x256xi1>, vector<2x256xf32>
      %300 = vector.broadcast %294 : vector<2x1xf32> to vector<2x256xf32>
      %301 = arith.mulf %300, %299 : vector<2x256xf32>
      %302 = arith.addf %289, %301 : vector<2x256xf32>
      %c19 = arith.constant 19 : index
      %303 = memref.load %arg3[%c19] : memref<98xf32, #tpu.memory_space<smem>>
      %c68 = arith.constant 68 : index
      %304 = memref.load %arg3[%c68] : memref<98xf32, #tpu.memory_space<smem>>
      %305 = vector.broadcast %303 : f32 to vector<2x1xf32>
      %306 = vector.broadcast %304 : f32 to vector<2x1xf32>
      %307 = arith.select %66, %305, %306 : vector<2x1xi1>, vector<2x1xf32>
      %308 = vector.extract_strided_slice %34 {offsets = [0, 37], sizes = [2, 256], strides = [1, 1]} : vector<2x358xf32> to vector<2x256xf32>
      %cst_47 = arith.constant 0.000000e+00 : f32
      %309 = vector.shape_cast %61 : vector<1x256xi1> to vector<1x256xi1>
      %310 = vector.broadcast %309 : vector<1x256xi1> to vector<2x256xi1>
      %311 = vector.broadcast %cst_47 : f32 to vector<2x256xf32>
      %312 = arith.select %310, %308, %311 : vector<2x256xi1>, vector<2x256xf32>
      %313 = vector.broadcast %307 : vector<2x1xf32> to vector<2x256xf32>
      %314 = arith.mulf %313, %312 : vector<2x256xf32>
      %315 = arith.addf %302, %314 : vector<2x256xf32>
      %c20 = arith.constant 20 : index
      %316 = memref.load %arg3[%c20] : memref<98xf32, #tpu.memory_space<smem>>
      %c69 = arith.constant 69 : index
      %317 = memref.load %arg3[%c69] : memref<98xf32, #tpu.memory_space<smem>>
      %318 = vector.broadcast %316 : f32 to vector<2x1xf32>
      %319 = vector.broadcast %317 : f32 to vector<2x1xf32>
      %320 = arith.select %66, %318, %319 : vector<2x1xi1>, vector<2x1xf32>
      %321 = vector.extract_strided_slice %34 {offsets = [0, 38], sizes = [2, 256], strides = [1, 1]} : vector<2x358xf32> to vector<2x256xf32>
      %cst_48 = arith.constant 0.000000e+00 : f32
      %322 = vector.shape_cast %63 : vector<1x256xi1> to vector<1x256xi1>
      %323 = vector.broadcast %322 : vector<1x256xi1> to vector<2x256xi1>
      %324 = vector.broadcast %cst_48 : f32 to vector<2x256xf32>
      %325 = arith.select %323, %321, %324 : vector<2x256xi1>, vector<2x256xf32>
      %326 = vector.broadcast %320 : vector<2x1xf32> to vector<2x256xf32>
      %327 = arith.mulf %326, %325 : vector<2x256xf32>
      %328 = arith.addf %315, %327 : vector<2x256xf32>
      %c21 = arith.constant 21 : index
      %329 = memref.load %arg3[%c21] : memref<98xf32, #tpu.memory_space<smem>>
      %c70 = arith.constant 70 : index
      %330 = memref.load %arg3[%c70] : memref<98xf32, #tpu.memory_space<smem>>
      %331 = vector.broadcast %329 : f32 to vector<2x1xf32>
      %332 = vector.broadcast %330 : f32 to vector<2x1xf32>
      %333 = arith.select %66, %331, %332 : vector<2x1xi1>, vector<2x1xf32>
      %334 = vector.extract_strided_slice %34 {offsets = [0, 48], sizes = [2, 256], strides = [1, 1]} : vector<2x358xf32> to vector<2x256xf32>
      %cst_49 = arith.constant 0.000000e+00 : f32
      %335 = vector.shape_cast %53 : vector<1x256xi1> to vector<1x256xi1>
      %336 = vector.broadcast %335 : vector<1x256xi1> to vector<2x256xi1>
      %337 = vector.broadcast %cst_49 : f32 to vector<2x256xf32>
      %338 = arith.select %336, %334, %337 : vector<2x256xi1>, vector<2x256xf32>
      %339 = vector.broadcast %333 : vector<2x1xf32> to vector<2x256xf32>
      %340 = arith.mulf %339, %338 : vector<2x256xf32>
      %341 = arith.addf %328, %340 : vector<2x256xf32>
      %c22 = arith.constant 22 : index
      %342 = memref.load %arg3[%c22] : memref<98xf32, #tpu.memory_space<smem>>
      %c71 = arith.constant 71 : index
      %343 = memref.load %arg3[%c71] : memref<98xf32, #tpu.memory_space<smem>>
      %344 = vector.broadcast %342 : f32 to vector<2x1xf32>
      %345 = vector.broadcast %343 : f32 to vector<2x1xf32>
      %346 = arith.select %66, %344, %345 : vector<2x1xi1>, vector<2x1xf32>
      %347 = vector.extract_strided_slice %34 {offsets = [0, 49], sizes = [2, 256], strides = [1, 1]} : vector<2x358xf32> to vector<2x256xf32>
      %cst_50 = arith.constant 0.000000e+00 : f32
      %348 = vector.shape_cast %55 : vector<1x256xi1> to vector<1x256xi1>
      %349 = vector.broadcast %348 : vector<1x256xi1> to vector<2x256xi1>
      %350 = vector.broadcast %cst_50 : f32 to vector<2x256xf32>
      %351 = arith.select %349, %347, %350 : vector<2x256xi1>, vector<2x256xf32>
      %352 = vector.broadcast %346 : vector<2x1xf32> to vector<2x256xf32>
      %353 = arith.mulf %352, %351 : vector<2x256xf32>
      %354 = arith.addf %341, %353 : vector<2x256xf32>
      %c23 = arith.constant 23 : index
      %355 = memref.load %arg3[%c23] : memref<98xf32, #tpu.memory_space<smem>>
      %c72 = arith.constant 72 : index
      %356 = memref.load %arg3[%c72] : memref<98xf32, #tpu.memory_space<smem>>
      %357 = vector.broadcast %355 : f32 to vector<2x1xf32>
      %358 = vector.broadcast %356 : f32 to vector<2x1xf32>
      %359 = arith.select %66, %357, %358 : vector<2x1xi1>, vector<2x1xf32>
      %360 = vector.extract_strided_slice %34 {offsets = [0, 50], sizes = [2, 256], strides = [1, 1]} : vector<2x358xf32> to vector<2x256xf32>
      %cst_51 = arith.constant 0.000000e+00 : f32
      %361 = vector.shape_cast %57 : vector<1x256xi1> to vector<1x256xi1>
      %362 = vector.broadcast %361 : vector<1x256xi1> to vector<2x256xi1>
      %363 = vector.broadcast %cst_51 : f32 to vector<2x256xf32>
      %364 = arith.select %362, %360, %363 : vector<2x256xi1>, vector<2x256xf32>
      %365 = vector.broadcast %359 : vector<2x1xf32> to vector<2x256xf32>
      %366 = arith.mulf %365, %364 : vector<2x256xf32>
      %367 = arith.addf %354, %366 : vector<2x256xf32>
      %c24 = arith.constant 24 : index
      %368 = memref.load %arg3[%c24] : memref<98xf32, #tpu.memory_space<smem>>
      %c73 = arith.constant 73 : index
      %369 = memref.load %arg3[%c73] : memref<98xf32, #tpu.memory_space<smem>>
      %370 = vector.broadcast %368 : f32 to vector<2x1xf32>
      %371 = vector.broadcast %369 : f32 to vector<2x1xf32>
      %372 = arith.select %66, %370, %371 : vector<2x1xi1>, vector<2x1xf32>
      %373 = vector.extract_strided_slice %34 {offsets = [0, 51], sizes = [2, 256], strides = [1, 1]} : vector<2x358xf32> to vector<2x256xf32>
      %374 = vector.broadcast %372 : vector<2x1xf32> to vector<2x256xf32>
      %375 = arith.mulf %374, %373 : vector<2x256xf32>
      %376 = arith.addf %367, %375 : vector<2x256xf32>
      %c25 = arith.constant 25 : index
      %377 = memref.load %arg3[%c25] : memref<98xf32, #tpu.memory_space<smem>>
      %c74 = arith.constant 74 : index
      %378 = memref.load %arg3[%c74] : memref<98xf32, #tpu.memory_space<smem>>
      %379 = vector.broadcast %377 : f32 to vector<2x1xf32>
      %380 = vector.broadcast %378 : f32 to vector<2x1xf32>
      %381 = arith.select %66, %379, %380 : vector<2x1xi1>, vector<2x1xf32>
      %382 = vector.extract_strided_slice %34 {offsets = [0, 52], sizes = [2, 256], strides = [1, 1]} : vector<2x358xf32> to vector<2x256xf32>
      %cst_52 = arith.constant 0.000000e+00 : f32
      %383 = vector.shape_cast %59 : vector<1x256xi1> to vector<1x256xi1>
      %384 = vector.broadcast %383 : vector<1x256xi1> to vector<2x256xi1>
      %385 = vector.broadcast %cst_52 : f32 to vector<2x256xf32>
      %386 = arith.select %384, %382, %385 : vector<2x256xi1>, vector<2x256xf32>
      %387 = vector.broadcast %381 : vector<2x1xf32> to vector<2x256xf32>
      %388 = arith.mulf %387, %386 : vector<2x256xf32>
      %389 = arith.addf %376, %388 : vector<2x256xf32>
      %c26 = arith.constant 26 : index
      %390 = memref.load %arg3[%c26] : memref<98xf32, #tpu.memory_space<smem>>
      %c75 = arith.constant 75 : index
      %391 = memref.load %arg3[%c75] : memref<98xf32, #tpu.memory_space<smem>>
      %392 = vector.broadcast %390 : f32 to vector<2x1xf32>
      %393 = vector.broadcast %391 : f32 to vector<2x1xf32>
      %394 = arith.select %66, %392, %393 : vector<2x1xi1>, vector<2x1xf32>
      %395 = vector.extract_strided_slice %34 {offsets = [0, 53], sizes = [2, 256], strides = [1, 1]} : vector<2x358xf32> to vector<2x256xf32>
      %cst_53 = arith.constant 0.000000e+00 : f32
      %396 = vector.shape_cast %61 : vector<1x256xi1> to vector<1x256xi1>
      %397 = vector.broadcast %396 : vector<1x256xi1> to vector<2x256xi1>
      %398 = vector.broadcast %cst_53 : f32 to vector<2x256xf32>
      %399 = arith.select %397, %395, %398 : vector<2x256xi1>, vector<2x256xf32>
      %400 = vector.broadcast %394 : vector<2x1xf32> to vector<2x256xf32>
      %401 = arith.mulf %400, %399 : vector<2x256xf32>
      %402 = arith.addf %389, %401 : vector<2x256xf32>
      %c27 = arith.constant 27 : index
      %403 = memref.load %arg3[%c27] : memref<98xf32, #tpu.memory_space<smem>>
      %c76 = arith.constant 76 : index
      %404 = memref.load %arg3[%c76] : memref<98xf32, #tpu.memory_space<smem>>
      %405 = vector.broadcast %403 : f32 to vector<2x1xf32>
      %406 = vector.broadcast %404 : f32 to vector<2x1xf32>
      %407 = arith.select %66, %405, %406 : vector<2x1xi1>, vector<2x1xf32>
      %408 = vector.extract_strided_slice %34 {offsets = [0, 54], sizes = [2, 256], strides = [1, 1]} : vector<2x358xf32> to vector<2x256xf32>
      %cst_54 = arith.constant 0.000000e+00 : f32
      %409 = vector.shape_cast %63 : vector<1x256xi1> to vector<1x256xi1>
      %410 = vector.broadcast %409 : vector<1x256xi1> to vector<2x256xi1>
      %411 = vector.broadcast %cst_54 : f32 to vector<2x256xf32>
      %412 = arith.select %410, %408, %411 : vector<2x256xi1>, vector<2x256xf32>
      %413 = vector.broadcast %407 : vector<2x1xf32> to vector<2x256xf32>
      %414 = arith.mulf %413, %412 : vector<2x256xf32>
      %415 = arith.addf %402, %414 : vector<2x256xf32>
      %c28 = arith.constant 28 : index
      %416 = memref.load %arg3[%c28] : memref<98xf32, #tpu.memory_space<smem>>
      %c77 = arith.constant 77 : index
      %417 = memref.load %arg3[%c77] : memref<98xf32, #tpu.memory_space<smem>>
      %418 = vector.broadcast %416 : f32 to vector<2x1xf32>
      %419 = vector.broadcast %417 : f32 to vector<2x1xf32>
      %420 = arith.select %66, %418, %419 : vector<2x1xi1>, vector<2x1xf32>
      %421 = vector.extract_strided_slice %34 {offsets = [0, 64], sizes = [2, 256], strides = [1, 1]} : vector<2x358xf32> to vector<2x256xf32>
      %cst_55 = arith.constant 0.000000e+00 : f32
      %422 = vector.shape_cast %53 : vector<1x256xi1> to vector<1x256xi1>
      %423 = vector.broadcast %422 : vector<1x256xi1> to vector<2x256xi1>
      %424 = vector.broadcast %cst_55 : f32 to vector<2x256xf32>
      %425 = arith.select %423, %421, %424 : vector<2x256xi1>, vector<2x256xf32>
      %426 = vector.broadcast %420 : vector<2x1xf32> to vector<2x256xf32>
      %427 = arith.mulf %426, %425 : vector<2x256xf32>
      %428 = arith.addf %415, %427 : vector<2x256xf32>
      %c29 = arith.constant 29 : index
      %429 = memref.load %arg3[%c29] : memref<98xf32, #tpu.memory_space<smem>>
      %c78 = arith.constant 78 : index
      %430 = memref.load %arg3[%c78] : memref<98xf32, #tpu.memory_space<smem>>
      %431 = vector.broadcast %429 : f32 to vector<2x1xf32>
      %432 = vector.broadcast %430 : f32 to vector<2x1xf32>
      %433 = arith.select %66, %431, %432 : vector<2x1xi1>, vector<2x1xf32>
      %434 = vector.extract_strided_slice %34 {offsets = [0, 65], sizes = [2, 256], strides = [1, 1]} : vector<2x358xf32> to vector<2x256xf32>
      %cst_56 = arith.constant 0.000000e+00 : f32
      %435 = vector.shape_cast %55 : vector<1x256xi1> to vector<1x256xi1>
      %436 = vector.broadcast %435 : vector<1x256xi1> to vector<2x256xi1>
      %437 = vector.broadcast %cst_56 : f32 to vector<2x256xf32>
      %438 = arith.select %436, %434, %437 : vector<2x256xi1>, vector<2x256xf32>
      %439 = vector.broadcast %433 : vector<2x1xf32> to vector<2x256xf32>
      %440 = arith.mulf %439, %438 : vector<2x256xf32>
      %441 = arith.addf %428, %440 : vector<2x256xf32>
      %c30 = arith.constant 30 : index
      %442 = memref.load %arg3[%c30] : memref<98xf32, #tpu.memory_space<smem>>
      %c79 = arith.constant 79 : index
      %443 = memref.load %arg3[%c79] : memref<98xf32, #tpu.memory_space<smem>>
      %444 = vector.broadcast %442 : f32 to vector<2x1xf32>
      %445 = vector.broadcast %443 : f32 to vector<2x1xf32>
      %446 = arith.select %66, %444, %445 : vector<2x1xi1>, vector<2x1xf32>
      %447 = vector.extract_strided_slice %34 {offsets = [0, 66], sizes = [2, 256], strides = [1, 1]} : vector<2x358xf32> to vector<2x256xf32>
      %cst_57 = arith.constant 0.000000e+00 : f32
      %448 = vector.shape_cast %57 : vector<1x256xi1> to vector<1x256xi1>
      %449 = vector.broadcast %448 : vector<1x256xi1> to vector<2x256xi1>
      %450 = vector.broadcast %cst_57 : f32 to vector<2x256xf32>
      %451 = arith.select %449, %447, %450 : vector<2x256xi1>, vector<2x256xf32>
      %452 = vector.broadcast %446 : vector<2x1xf32> to vector<2x256xf32>
      %453 = arith.mulf %452, %451 : vector<2x256xf32>
      %454 = arith.addf %441, %453 : vector<2x256xf32>
      %c31 = arith.constant 31 : index
      %455 = memref.load %arg3[%c31] : memref<98xf32, #tpu.memory_space<smem>>
      %c80 = arith.constant 80 : index
      %456 = memref.load %arg3[%c80] : memref<98xf32, #tpu.memory_space<smem>>
      %457 = vector.broadcast %455 : f32 to vector<2x1xf32>
      %458 = vector.broadcast %456 : f32 to vector<2x1xf32>
      %459 = arith.select %66, %457, %458 : vector<2x1xi1>, vector<2x1xf32>
      %460 = vector.extract_strided_slice %34 {offsets = [0, 67], sizes = [2, 256], strides = [1, 1]} : vector<2x358xf32> to vector<2x256xf32>
      %461 = vector.broadcast %459 : vector<2x1xf32> to vector<2x256xf32>
      %462 = arith.mulf %461, %460 : vector<2x256xf32>
      %463 = arith.addf %454, %462 : vector<2x256xf32>
      %c32 = arith.constant 32 : index
      %464 = memref.load %arg3[%c32] : memref<98xf32, #tpu.memory_space<smem>>
      %c81 = arith.constant 81 : index
      %465 = memref.load %arg3[%c81] : memref<98xf32, #tpu.memory_space<smem>>
      %466 = vector.broadcast %464 : f32 to vector<2x1xf32>
      %467 = vector.broadcast %465 : f32 to vector<2x1xf32>
      %468 = arith.select %66, %466, %467 : vector<2x1xi1>, vector<2x1xf32>
      %469 = vector.extract_strided_slice %34 {offsets = [0, 68], sizes = [2, 256], strides = [1, 1]} : vector<2x358xf32> to vector<2x256xf32>
      %cst_58 = arith.constant 0.000000e+00 : f32
      %470 = vector.shape_cast %59 : vector<1x256xi1> to vector<1x256xi1>
      %471 = vector.broadcast %470 : vector<1x256xi1> to vector<2x256xi1>
      %472 = vector.broadcast %cst_58 : f32 to vector<2x256xf32>
      %473 = arith.select %471, %469, %472 : vector<2x256xi1>, vector<2x256xf32>
      %474 = vector.broadcast %468 : vector<2x1xf32> to vector<2x256xf32>
      %475 = arith.mulf %474, %473 : vector<2x256xf32>
      %476 = arith.addf %463, %475 : vector<2x256xf32>
      %c33 = arith.constant 33 : index
      %477 = memref.load %arg3[%c33] : memref<98xf32, #tpu.memory_space<smem>>
      %c82 = arith.constant 82 : index
      %478 = memref.load %arg3[%c82] : memref<98xf32, #tpu.memory_space<smem>>
      %479 = vector.broadcast %477 : f32 to vector<2x1xf32>
      %480 = vector.broadcast %478 : f32 to vector<2x1xf32>
      %481 = arith.select %66, %479, %480 : vector<2x1xi1>, vector<2x1xf32>
      %482 = vector.extract_strided_slice %34 {offsets = [0, 69], sizes = [2, 256], strides = [1, 1]} : vector<2x358xf32> to vector<2x256xf32>
      %cst_59 = arith.constant 0.000000e+00 : f32
      %483 = vector.shape_cast %61 : vector<1x256xi1> to vector<1x256xi1>
      %484 = vector.broadcast %483 : vector<1x256xi1> to vector<2x256xi1>
      %485 = vector.broadcast %cst_59 : f32 to vector<2x256xf32>
      %486 = arith.select %484, %482, %485 : vector<2x256xi1>, vector<2x256xf32>
      %487 = vector.broadcast %481 : vector<2x1xf32> to vector<2x256xf32>
      %488 = arith.mulf %487, %486 : vector<2x256xf32>
      %489 = arith.addf %476, %488 : vector<2x256xf32>
      %c34 = arith.constant 34 : index
      %490 = memref.load %arg3[%c34] : memref<98xf32, #tpu.memory_space<smem>>
      %c83 = arith.constant 83 : index
      %491 = memref.load %arg3[%c83] : memref<98xf32, #tpu.memory_space<smem>>
      %492 = vector.broadcast %490 : f32 to vector<2x1xf32>
      %493 = vector.broadcast %491 : f32 to vector<2x1xf32>
      %494 = arith.select %66, %492, %493 : vector<2x1xi1>, vector<2x1xf32>
      %495 = vector.extract_strided_slice %34 {offsets = [0, 70], sizes = [2, 256], strides = [1, 1]} : vector<2x358xf32> to vector<2x256xf32>
      %cst_60 = arith.constant 0.000000e+00 : f32
      %496 = vector.shape_cast %63 : vector<1x256xi1> to vector<1x256xi1>
      %497 = vector.broadcast %496 : vector<1x256xi1> to vector<2x256xi1>
      %498 = vector.broadcast %cst_60 : f32 to vector<2x256xf32>
      %499 = arith.select %497, %495, %498 : vector<2x256xi1>, vector<2x256xf32>
      %500 = vector.broadcast %494 : vector<2x1xf32> to vector<2x256xf32>
      %501 = arith.mulf %500, %499 : vector<2x256xf32>
      %502 = arith.addf %489, %501 : vector<2x256xf32>
      %c35 = arith.constant 35 : index
      %503 = memref.load %arg3[%c35] : memref<98xf32, #tpu.memory_space<smem>>
      %c84 = arith.constant 84 : index
      %504 = memref.load %arg3[%c84] : memref<98xf32, #tpu.memory_space<smem>>
      %505 = vector.broadcast %503 : f32 to vector<2x1xf32>
      %506 = vector.broadcast %504 : f32 to vector<2x1xf32>
      %507 = arith.select %66, %505, %506 : vector<2x1xi1>, vector<2x1xf32>
      %508 = vector.extract_strided_slice %34 {offsets = [0, 80], sizes = [2, 256], strides = [1, 1]} : vector<2x358xf32> to vector<2x256xf32>
      %cst_61 = arith.constant 0.000000e+00 : f32
      %509 = vector.shape_cast %53 : vector<1x256xi1> to vector<1x256xi1>
      %510 = vector.broadcast %509 : vector<1x256xi1> to vector<2x256xi1>
      %511 = vector.broadcast %cst_61 : f32 to vector<2x256xf32>
      %512 = arith.select %510, %508, %511 : vector<2x256xi1>, vector<2x256xf32>
      %513 = vector.broadcast %507 : vector<2x1xf32> to vector<2x256xf32>
      %514 = arith.mulf %513, %512 : vector<2x256xf32>
      %515 = arith.addf %502, %514 : vector<2x256xf32>
      %c36 = arith.constant 36 : index
      %516 = memref.load %arg3[%c36] : memref<98xf32, #tpu.memory_space<smem>>
      %c85 = arith.constant 85 : index
      %517 = memref.load %arg3[%c85] : memref<98xf32, #tpu.memory_space<smem>>
      %518 = vector.broadcast %516 : f32 to vector<2x1xf32>
      %519 = vector.broadcast %517 : f32 to vector<2x1xf32>
      %520 = arith.select %66, %518, %519 : vector<2x1xi1>, vector<2x1xf32>
      %521 = vector.extract_strided_slice %34 {offsets = [0, 81], sizes = [2, 256], strides = [1, 1]} : vector<2x358xf32> to vector<2x256xf32>
      %cst_62 = arith.constant 0.000000e+00 : f32
      %522 = vector.shape_cast %55 : vector<1x256xi1> to vector<1x256xi1>
      %523 = vector.broadcast %522 : vector<1x256xi1> to vector<2x256xi1>
      %524 = vector.broadcast %cst_62 : f32 to vector<2x256xf32>
      %525 = arith.select %523, %521, %524 : vector<2x256xi1>, vector<2x256xf32>
      %526 = vector.broadcast %520 : vector<2x1xf32> to vector<2x256xf32>
      %527 = arith.mulf %526, %525 : vector<2x256xf32>
      %528 = arith.addf %515, %527 : vector<2x256xf32>
      %c37 = arith.constant 37 : index
      %529 = memref.load %arg3[%c37] : memref<98xf32, #tpu.memory_space<smem>>
      %c86 = arith.constant 86 : index
      %530 = memref.load %arg3[%c86] : memref<98xf32, #tpu.memory_space<smem>>
      %531 = vector.broadcast %529 : f32 to vector<2x1xf32>
      %532 = vector.broadcast %530 : f32 to vector<2x1xf32>
      %533 = arith.select %66, %531, %532 : vector<2x1xi1>, vector<2x1xf32>
      %534 = vector.extract_strided_slice %34 {offsets = [0, 82], sizes = [2, 256], strides = [1, 1]} : vector<2x358xf32> to vector<2x256xf32>
      %cst_63 = arith.constant 0.000000e+00 : f32
      %535 = vector.shape_cast %57 : vector<1x256xi1> to vector<1x256xi1>
      %536 = vector.broadcast %535 : vector<1x256xi1> to vector<2x256xi1>
      %537 = vector.broadcast %cst_63 : f32 to vector<2x256xf32>
      %538 = arith.select %536, %534, %537 : vector<2x256xi1>, vector<2x256xf32>
      %539 = vector.broadcast %533 : vector<2x1xf32> to vector<2x256xf32>
      %540 = arith.mulf %539, %538 : vector<2x256xf32>
      %541 = arith.addf %528, %540 : vector<2x256xf32>
      %c38 = arith.constant 38 : index
      %542 = memref.load %arg3[%c38] : memref<98xf32, #tpu.memory_space<smem>>
      %c87 = arith.constant 87 : index
      %543 = memref.load %arg3[%c87] : memref<98xf32, #tpu.memory_space<smem>>
      %544 = vector.broadcast %542 : f32 to vector<2x1xf32>
      %545 = vector.broadcast %543 : f32 to vector<2x1xf32>
      %546 = arith.select %66, %544, %545 : vector<2x1xi1>, vector<2x1xf32>
      %547 = vector.extract_strided_slice %34 {offsets = [0, 83], sizes = [2, 256], strides = [1, 1]} : vector<2x358xf32> to vector<2x256xf32>
      %548 = vector.broadcast %546 : vector<2x1xf32> to vector<2x256xf32>
      %549 = arith.mulf %548, %547 : vector<2x256xf32>
      %550 = arith.addf %541, %549 : vector<2x256xf32>
      %c39 = arith.constant 39 : index
      %551 = memref.load %arg3[%c39] : memref<98xf32, #tpu.memory_space<smem>>
      %c88 = arith.constant 88 : index
      %552 = memref.load %arg3[%c88] : memref<98xf32, #tpu.memory_space<smem>>
      %553 = vector.broadcast %551 : f32 to vector<2x1xf32>
      %554 = vector.broadcast %552 : f32 to vector<2x1xf32>
      %555 = arith.select %66, %553, %554 : vector<2x1xi1>, vector<2x1xf32>
      %556 = vector.extract_strided_slice %34 {offsets = [0, 84], sizes = [2, 256], strides = [1, 1]} : vector<2x358xf32> to vector<2x256xf32>
      %cst_64 = arith.constant 0.000000e+00 : f32
      %557 = vector.shape_cast %59 : vector<1x256xi1> to vector<1x256xi1>
      %558 = vector.broadcast %557 : vector<1x256xi1> to vector<2x256xi1>
      %559 = vector.broadcast %cst_64 : f32 to vector<2x256xf32>
      %560 = arith.select %558, %556, %559 : vector<2x256xi1>, vector<2x256xf32>
      %561 = vector.broadcast %555 : vector<2x1xf32> to vector<2x256xf32>
      %562 = arith.mulf %561, %560 : vector<2x256xf32>
      %563 = arith.addf %550, %562 : vector<2x256xf32>
      %c40 = arith.constant 40 : index
      %564 = memref.load %arg3[%c40] : memref<98xf32, #tpu.memory_space<smem>>
      %c89 = arith.constant 89 : index
      %565 = memref.load %arg3[%c89] : memref<98xf32, #tpu.memory_space<smem>>
      %566 = vector.broadcast %564 : f32 to vector<2x1xf32>
      %567 = vector.broadcast %565 : f32 to vector<2x1xf32>
      %568 = arith.select %66, %566, %567 : vector<2x1xi1>, vector<2x1xf32>
      %569 = vector.extract_strided_slice %34 {offsets = [0, 85], sizes = [2, 256], strides = [1, 1]} : vector<2x358xf32> to vector<2x256xf32>
      %cst_65 = arith.constant 0.000000e+00 : f32
      %570 = vector.shape_cast %61 : vector<1x256xi1> to vector<1x256xi1>
      %571 = vector.broadcast %570 : vector<1x256xi1> to vector<2x256xi1>
      %572 = vector.broadcast %cst_65 : f32 to vector<2x256xf32>
      %573 = arith.select %571, %569, %572 : vector<2x256xi1>, vector<2x256xf32>
      %574 = vector.broadcast %568 : vector<2x1xf32> to vector<2x256xf32>
      %575 = arith.mulf %574, %573 : vector<2x256xf32>
      %576 = arith.addf %563, %575 : vector<2x256xf32>
      %c41 = arith.constant 41 : index
      %577 = memref.load %arg3[%c41] : memref<98xf32, #tpu.memory_space<smem>>
      %c90 = arith.constant 90 : index
      %578 = memref.load %arg3[%c90] : memref<98xf32, #tpu.memory_space<smem>>
      %579 = vector.broadcast %577 : f32 to vector<2x1xf32>
      %580 = vector.broadcast %578 : f32 to vector<2x1xf32>
      %581 = arith.select %66, %579, %580 : vector<2x1xi1>, vector<2x1xf32>
      %582 = vector.extract_strided_slice %34 {offsets = [0, 86], sizes = [2, 256], strides = [1, 1]} : vector<2x358xf32> to vector<2x256xf32>
      %cst_66 = arith.constant 0.000000e+00 : f32
      %583 = vector.shape_cast %63 : vector<1x256xi1> to vector<1x256xi1>
      %584 = vector.broadcast %583 : vector<1x256xi1> to vector<2x256xi1>
      %585 = vector.broadcast %cst_66 : f32 to vector<2x256xf32>
      %586 = arith.select %584, %582, %585 : vector<2x256xi1>, vector<2x256xf32>
      %587 = vector.broadcast %581 : vector<2x1xf32> to vector<2x256xf32>
      %588 = arith.mulf %587, %586 : vector<2x256xf32>
      %589 = arith.addf %576, %588 : vector<2x256xf32>
      %c42 = arith.constant 42 : index
      %590 = memref.load %arg3[%c42] : memref<98xf32, #tpu.memory_space<smem>>
      %c91 = arith.constant 91 : index
      %591 = memref.load %arg3[%c91] : memref<98xf32, #tpu.memory_space<smem>>
      %592 = vector.broadcast %590 : f32 to vector<2x1xf32>
      %593 = vector.broadcast %591 : f32 to vector<2x1xf32>
      %594 = arith.select %66, %592, %593 : vector<2x1xi1>, vector<2x1xf32>
      %595 = vector.extract_strided_slice %34 {offsets = [0, 96], sizes = [2, 256], strides = [1, 1]} : vector<2x358xf32> to vector<2x256xf32>
      %cst_67 = arith.constant 0.000000e+00 : f32
      %596 = vector.shape_cast %53 : vector<1x256xi1> to vector<1x256xi1>
      %597 = vector.broadcast %596 : vector<1x256xi1> to vector<2x256xi1>
      %598 = vector.broadcast %cst_67 : f32 to vector<2x256xf32>
      %599 = arith.select %597, %595, %598 : vector<2x256xi1>, vector<2x256xf32>
      %600 = vector.broadcast %594 : vector<2x1xf32> to vector<2x256xf32>
      %601 = arith.mulf %600, %599 : vector<2x256xf32>
      %602 = arith.addf %589, %601 : vector<2x256xf32>
      %c43 = arith.constant 43 : index
      %603 = memref.load %arg3[%c43] : memref<98xf32, #tpu.memory_space<smem>>
      %c92 = arith.constant 92 : index
      %604 = memref.load %arg3[%c92] : memref<98xf32, #tpu.memory_space<smem>>
      %605 = vector.broadcast %603 : f32 to vector<2x1xf32>
      %606 = vector.broadcast %604 : f32 to vector<2x1xf32>
      %607 = arith.select %66, %605, %606 : vector<2x1xi1>, vector<2x1xf32>
      %608 = vector.extract_strided_slice %34 {offsets = [0, 97], sizes = [2, 256], strides = [1, 1]} : vector<2x358xf32> to vector<2x256xf32>
      %cst_68 = arith.constant 0.000000e+00 : f32
      %609 = vector.shape_cast %55 : vector<1x256xi1> to vector<1x256xi1>
      %610 = vector.broadcast %609 : vector<1x256xi1> to vector<2x256xi1>
      %611 = vector.broadcast %cst_68 : f32 to vector<2x256xf32>
      %612 = arith.select %610, %608, %611 : vector<2x256xi1>, vector<2x256xf32>
      %613 = vector.broadcast %607 : vector<2x1xf32> to vector<2x256xf32>
      %614 = arith.mulf %613, %612 : vector<2x256xf32>
      %615 = arith.addf %602, %614 : vector<2x256xf32>
      %c44 = arith.constant 44 : index
      %616 = memref.load %arg3[%c44] : memref<98xf32, #tpu.memory_space<smem>>
      %c93 = arith.constant 93 : index
      %617 = memref.load %arg3[%c93] : memref<98xf32, #tpu.memory_space<smem>>
      %618 = vector.broadcast %616 : f32 to vector<2x1xf32>
      %619 = vector.broadcast %617 : f32 to vector<2x1xf32>
      %620 = arith.select %66, %618, %619 : vector<2x1xi1>, vector<2x1xf32>
      %621 = vector.extract_strided_slice %34 {offsets = [0, 98], sizes = [2, 256], strides = [1, 1]} : vector<2x358xf32> to vector<2x256xf32>
      %cst_69 = arith.constant 0.000000e+00 : f32
      %622 = vector.shape_cast %57 : vector<1x256xi1> to vector<1x256xi1>
      %623 = vector.broadcast %622 : vector<1x256xi1> to vector<2x256xi1>
      %624 = vector.broadcast %cst_69 : f32 to vector<2x256xf32>
      %625 = arith.select %623, %621, %624 : vector<2x256xi1>, vector<2x256xf32>
      %626 = vector.broadcast %620 : vector<2x1xf32> to vector<2x256xf32>
      %627 = arith.mulf %626, %625 : vector<2x256xf32>
      %628 = arith.addf %615, %627 : vector<2x256xf32>
      %c45 = arith.constant 45 : index
      %629 = memref.load %arg3[%c45] : memref<98xf32, #tpu.memory_space<smem>>
      %c94 = arith.constant 94 : index
      %630 = memref.load %arg3[%c94] : memref<98xf32, #tpu.memory_space<smem>>
      %631 = vector.broadcast %629 : f32 to vector<2x1xf32>
      %632 = vector.broadcast %630 : f32 to vector<2x1xf32>
      %633 = arith.select %66, %631, %632 : vector<2x1xi1>, vector<2x1xf32>
      %634 = vector.extract_strided_slice %34 {offsets = [0, 99], sizes = [2, 256], strides = [1, 1]} : vector<2x358xf32> to vector<2x256xf32>
      %635 = vector.broadcast %633 : vector<2x1xf32> to vector<2x256xf32>
      %636 = arith.mulf %635, %634 : vector<2x256xf32>
      %637 = arith.addf %628, %636 : vector<2x256xf32>
      %c46 = arith.constant 46 : index
      %638 = memref.load %arg3[%c46] : memref<98xf32, #tpu.memory_space<smem>>
      %c95 = arith.constant 95 : index
      %639 = memref.load %arg3[%c95] : memref<98xf32, #tpu.memory_space<smem>>
      %640 = vector.broadcast %638 : f32 to vector<2x1xf32>
      %641 = vector.broadcast %639 : f32 to vector<2x1xf32>
      %642 = arith.select %66, %640, %641 : vector<2x1xi1>, vector<2x1xf32>
      %643 = vector.extract_strided_slice %34 {offsets = [0, 100], sizes = [2, 256], strides = [1, 1]} : vector<2x358xf32> to vector<2x256xf32>
      %cst_70 = arith.constant 0.000000e+00 : f32
      %644 = vector.shape_cast %59 : vector<1x256xi1> to vector<1x256xi1>
      %645 = vector.broadcast %644 : vector<1x256xi1> to vector<2x256xi1>
      %646 = vector.broadcast %cst_70 : f32 to vector<2x256xf32>
      %647 = arith.select %645, %643, %646 : vector<2x256xi1>, vector<2x256xf32>
      %648 = vector.broadcast %642 : vector<2x1xf32> to vector<2x256xf32>
      %649 = arith.mulf %648, %647 : vector<2x256xf32>
      %650 = arith.addf %637, %649 : vector<2x256xf32>
      %c47 = arith.constant 47 : index
      %651 = memref.load %arg3[%c47] : memref<98xf32, #tpu.memory_space<smem>>
      %c96 = arith.constant 96 : index
      %652 = memref.load %arg3[%c96] : memref<98xf32, #tpu.memory_space<smem>>
      %653 = vector.broadcast %651 : f32 to vector<2x1xf32>
      %654 = vector.broadcast %652 : f32 to vector<2x1xf32>
      %655 = arith.select %66, %653, %654 : vector<2x1xi1>, vector<2x1xf32>
      %656 = vector.extract_strided_slice %34 {offsets = [0, 101], sizes = [2, 256], strides = [1, 1]} : vector<2x358xf32> to vector<2x256xf32>
      %cst_71 = arith.constant 0.000000e+00 : f32
      %657 = vector.shape_cast %61 : vector<1x256xi1> to vector<1x256xi1>
      %658 = vector.broadcast %657 : vector<1x256xi1> to vector<2x256xi1>
      %659 = vector.broadcast %cst_71 : f32 to vector<2x256xf32>
      %660 = arith.select %658, %656, %659 : vector<2x256xi1>, vector<2x256xf32>
      %661 = vector.broadcast %655 : vector<2x1xf32> to vector<2x256xf32>
      %662 = arith.mulf %661, %660 : vector<2x256xf32>
      %663 = arith.addf %650, %662 : vector<2x256xf32>
      %c48 = arith.constant 48 : index
      %664 = memref.load %arg3[%c48] : memref<98xf32, #tpu.memory_space<smem>>
      %c97 = arith.constant 97 : index
      %665 = memref.load %arg3[%c97] : memref<98xf32, #tpu.memory_space<smem>>
      %666 = vector.broadcast %664 : f32 to vector<2x1xf32>
      %667 = vector.broadcast %665 : f32 to vector<2x1xf32>
      %668 = arith.select %66, %666, %667 : vector<2x1xi1>, vector<2x1xf32>
      %669 = vector.extract_strided_slice %34 {offsets = [0, 102], sizes = [2, 256], strides = [1, 1]} : vector<2x358xf32> to vector<2x256xf32>
      %cst_72 = arith.constant 0.000000e+00 : f32
      %670 = vector.shape_cast %63 : vector<1x256xi1> to vector<1x256xi1>
      %671 = vector.broadcast %670 : vector<1x256xi1> to vector<2x256xi1>
      %672 = vector.broadcast %cst_72 : f32 to vector<2x256xf32>
      %673 = arith.select %671, %669, %672 : vector<2x256xi1>, vector<2x256xf32>
      %674 = vector.broadcast %668 : vector<2x1xf32> to vector<2x256xf32>
      %675 = arith.mulf %674, %673 : vector<2x256xf32>
      %676 = arith.addf %663, %675 : vector<2x256xf32>
      %cst_73 = arith.constant dense<0.000000e+00> : vector<256xf32>
      %677 = vector.multi_reduction <add>, %676, %cst_73 [0] : vector<2x256xf32> to vector<256xf32>
      %678 = vector.shape_cast %677 : vector<256xf32> to vector<1x256xf32>
      %679 = arith.negf %678 : vector<1x256xf32>
      %680 = math.exp %679 : vector<1x256xf32>
      %cst_74 = arith.constant 1.000000e+00 : f32
      %681 = vector.broadcast %cst_74 : f32 to vector<1x256xf32>
      %682 = arith.addf %681, %680 : vector<1x256xf32>
      %683 = arith.divf %681, %682 : vector<1x256xf32>
      %684 = vector.shape_cast %683 : vector<1x256xf32> to vector<1x1x256xf32>
      %c0_75 = arith.constant 0 : index
      %c0_76 = arith.constant 0 : index
      %c0_77 = arith.constant 0 : index
      %685 = vector.load %arg4[%c0_75, %c0_76, %c0_77] : memref<1x1x256xf32, #tpu.memory_space<vmem>>, vector<1x1x256xf32>
      tpu.vector_store %arg4[%c0_75, %c0_76, %c0_77], %684 {strides = array<i32>} : memref<1x1x256xf32, #tpu.memory_space<vmem>>, vector<1x1x256xf32>,
    } else {
    }
    return
  }
  func.func @transform_0(%arg0: i32, %arg1: i32) -> (i32, i32, i32) {
    %c0_i32 = arith.constant 0 : i32
    %c0_i32_0 = arith.constant 0 : i32
    return %arg0, %arg1, %c0_i32 : i32, i32, i32
  }
  func.func @transform_1(%arg0: i32, %arg1: i32) -> i32 {
    %c0_i32 = arith.constant 0 : i32
    %c0_i32_0 = arith.constant 0 : i32
    return %c0_i32 : i32
  }
  func.func @transform_2(%arg0: i32, %arg1: i32) -> (i32, i32, i32) {
    %c0_i32 = arith.constant 0 : i32
    %c0_i32_0 = arith.constant 0 : i32
    %c0_i32_1 = arith.constant 0 : i32
    return %arg0, %c0_i32, %c0_i32_0 : i32, i32, i32
  }
}

</mosaic_0001>

<llo_original>
// kernel: tpu_custom_call.1
$region0: #{tpu_custom_call.1}
  #allocation0 [shape = 'u32[]', space=smem, size = 0x4, offset = 0x4, fixed_abs, tag = 'smem constant byte address 0x4 - core index']
  #allocation1 [shape = 'u32[144,128]{1,0:T(1,128)}', space=vmem, size = 0x12000, scoped, tag = 'internal scratch']
  #allocation2 [shape = 'f32[8,256]{1,0:T(8,128)}', space=vmem, size = 0x2000, scoped, tag = 'scratch operand']
  #allocation3 [shape = 'f32[8,256]{1,0:T(8,128)}', space=vmem, size = 0x2000, scoped, tag = 'scratch operand']
  %s0 = inlined_call_operand.hbm [shape: f32[2,4,256], index: 0, kind: input, shape index: {}]
  %s1 = inlined_call_operand.vmem [shape: f32[98], index: 1, kind: input, shape index: {}]
  %s2 = inlined_call_operand.hbm [shape: f32[2,1,256], index: 2, kind: output, shape index: {}]
  %s3 = sld [smem:[#allocation0]]
  $region57: #{tpu_custom_call.1} parent=0
    _
  %s5 = ssub.s32 1, %s3
  %s6 = scalar_select 0, %s5, %s3
  $region1: #{tpu_custom_call.1} parent=0
    #allocation4 [shape = 'u8[8192]{0}', space=vmem, size = 0x2000, scoped, tag = 'input window, operand 0']
    #allocation5 [shape = 's32[2]{0}', space=sflag, size = 0x8, scoped, tag = 'scoped memory for tpu_custom_call.1']
    #allocation6 [shape = 's32[2]{0}', space=sflag, size = 0x8, scoped, tag = 'scoped memory for tpu_custom_call.1']
    #allocation7 [shape = 's32[2]{0}', space=sflag, size = 0x8, scoped, tag = 'scoped memory for tpu_custom_call.1']
    #allocation8 [shape = 'u8[512]{0}', space=smem, size = 0x200, scoped, tag = 'input window, operand 1, single buffered']
    #allocation9 [shape = 'u8[2048]{0}', space=vmem, size = 0x800, scoped, tag = 'output window, operand 0']
    %7 = vsyncpa [#allocation5], 0
    %s8 = scalar_lea.sflag [#allocation5], 1
    %9 = vsyncpa %s8, 0
    %10 = vsyncpa [#allocation7], 0
    %11 = vsyncpa [#allocation6], 0
    %s12 = scalar_lea.sflag [#allocation6], 1
    %13 = vsyncpa %s12, 0
    loop: start=0, step=1, limit=4
    $region2: #{tpu_custom_call.1} parent=1 // loop_pre_header
      _
    $region3: #{tpu_custom_call.1} parent=1 // loop_header
      %s15 = sphi 0, %s19
      %p16 = scmp.ge.s32.totalorder %s15, 4
      %s22 = sphi 0, %s34
      %s23 = sphi 0, %s30
      %s24 = sphi 0, %s22
      %s25 = sphi 0, %s23
      %s26 = sphi 0, %s24
      %s27 = sphi 0, %s25
      %s39 = sphi 0, %s41
      %s42 = sphi 0, %s39
      %s43 = sphi 0, %s42
      %s59 = sphi 0, %s43
      %s63 = sphi 0, %s63
      %s65 = sphi 0, %s63
      %s66 = sphi 0, %s65
      %s80 = sphi 0, %s66
      %s86 = sphi 0, %s88
      %s89 = sphi 0, %s86
      %s90 = sphi 0, %s89
      %s106 = sphi 0, %s90
    $region4: #{tpu_custom_call.1} parent=1 // loop_header_branch
      %18 = sbr.rel (%p16) target = $region8
    $region5: #{tpu_custom_call.1} parent=1 // loop_body
      %s20 = ssub.s32 %s15, 1
      %s21 = ssub.s32 %s15, 2
      %s28 = sadd.s32 1, %s23
      %p29 = scmp.ge.s32.totalorder %s28, 1
      %s30 = scalar_select %p29, 0, %s28
      %s31 = sadd.s32 1, %s22
      %s32 = scalar_select %p29, %s31, %s22
      %p33 = scmp.ge.s32.totalorder %s32, 2
      %s34 = scalar_select %p33, 0, %s32
      %s35 = ssub.s32 %s22, %s34
      %s36 = ssub.s32 %s23, %s30
      %s37 = sor.u32 %s35, %s36
      %p38 = scmp.eq.s32.totalorder %s37, 0
      %s40 = sadd.s32 %s39, 1
      %s41 = scalar_select %p38, %s39, %s40
      %p44 = pneg %p38
      %p45 = scmp.eq.s32.totalorder %s15, 1
      %p46 = por %p44, %p45
      %p47 = scmp.ne.s32.totalorder %s39, %s42
      %p48 = scmp.eq.s32.totalorder %s15, 0
      %p49 = por %p47, %p48
      %p50 = scmp.ne.s32.totalorder %s39, %s42
      %p51 = scmp.eq.s32.totalorder %s20, 1
      %p52 = por %p50, %p51
      %p53 = scmp.ne.s32.totalorder %s42, %s43
      %p54 = scmp.eq.s32.totalorder %s20, 0
      %p55 = por %p53, %p54
      %p56 = scmp.ne.s32.totalorder %s42, %s43
      %p57 = scmp.eq.s32.totalorder %s21, 1
      %p58 = por %p56, %p57
      %p60 = scmp.ne.s32.totalorder %s43, %s59
      %p61 = scmp.eq.s32.totalorder %s21, 0
      %p62 = por %p60, %p61
      %s64 = sadd.s32 %s63, 1
      %p67 = scmp.eq.s32.totalorder %s15, 1
      %p68 = scmp.ne.s32.totalorder %s63, %s65
      %p69 = scmp.eq.s32.totalorder %s15, 0
      %p70 = por %p68, %p69
      %p71 = scmp.ne.s32.totalorder %s63, %s65
      %p72 = scmp.eq.s32.totalorder %s20, 1
      %p73 = por %p71, %p72
      %p74 = scmp.ne.s32.totalorder %s65, %s66
      %p75 = scmp.eq.s32.totalorder %s20, 0
      %p76 = por %p74, %p75
      %p77 = scmp.ne.s32.totalorder %s65, %s66
      %p78 = scmp.eq.s32.totalorder %s21, 1
      %p79 = por %p77, %p78
      %p81 = scmp.ne.s32.totalorder %s66, %s80
      %p82 = scmp.eq.s32.totalorder %s21, 0
      %p83 = por %p81, %p82
      %s84 = ssub.s32 %s22, %s34
      %p85 = scmp.eq.s32.totalorder %s84, 0
      %s87 = sadd.s32 %s86, 1
      %s88 = scalar_select %p85, %s86, %s87
      %p91 = pneg %p85
      %p92 = scmp.eq.s32.totalorder %s15, 1
      %p93 = por %p91, %p92
      %p94 = scmp.ne.s32.totalorder %s86, %s89
      %p95 = scmp.eq.s32.totalorder %s15, 0
      %p96 = por %p94, %p95
      %p97 = scmp.ne.s32.totalorder %s86, %s89
      %p98 = scmp.eq.s32.totalorder %s20, 1
      %p99 = por %p97, %p98
      %p100 = scmp.ne.s32.totalorder %s89, %s90
      %p101 = scmp.eq.s32.totalorder %s20, 0
      %p102 = por %p100, %p101
      %p103 = scmp.ne.s32.totalorder %s89, %s90
      %p104 = scmp.eq.s32.totalorder %s21, 1
      %p105 = por %p103, %p104
      %p107 = scmp.ne.s32.totalorder %s90, %s106
      %p108 = scmp.eq.s32.totalorder %s21, 0
      %p109 = por %p107, %p108
      %p110 = scmp.le.s32.totalorder 1, %s15
      %p111 = scmp.lt.s32.totalorder %s15, 3
      %p112 = pnand %p110, %p111
      %p113 = pneg %p112
      // Predicated region
      $region9: #{tpu_custom_call.1} parent=5 // pred_check
        _
      $region10: #{tpu_custom_call.1} parent=5 // pred_check_branch
        %115 = sbr.rel (%p112) target = $region12
      $region11: #{tpu_custom_call.1} parent=5 // pred_region
        %s116 = ssub.s32 %s15, 1
        // Predicated region
        $region13: #{tpu_custom_call.1} parent=11 // pred_check
          %p117 = pneg %p76
        $region14: #{tpu_custom_call.1} parent=11 // pred_check_branch
          %119 = sbr.rel (%p117) target = $region16
        $region15: #{tpu_custom_call.1} parent=11 // pred_region
          %s121 = ssub.s32 16, 16
          %122 = vsyncadd [#allocation7], %s121
          %s124 = sshll.u32 %s1, 4
          %s125 = int_to_ptr.vmem [resolvable:$true] %s124
          %127 = dma.vmem_to_smem %s125, 16, [#allocation8], [#allocation7]
        $region16: #{tpu_custom_call.1} parent=11 // pred_fallthru
          _
      $region12: #{tpu_custom_call.1} parent=5 // pred_fallthru
        _
      %p128 = scmp.lt.s32.totalorder %s15, 2
      // Predicated region
      $region17: #{tpu_custom_call.1} parent=5 // pred_check
        %p129 = pneg %p128
      $region18: #{tpu_custom_call.1} parent=5 // pred_check_branch
        %131 = sbr.rel (%p129) target = $region20
      $region19: #{tpu_custom_call.1} parent=5 // pred_region
        // Predicated region
        $region21: #{tpu_custom_call.1} parent=19 // pred_check
          %p132 = pneg %p49
        $region22: #{tpu_custom_call.1} parent=19 // pred_check_branch
          %134 = sbr.rel (%p132) target = $region24
        $region23: #{tpu_custom_call.1} parent=19 // pred_region
          %s135 = sand.u32 %s39, 1
          %s136 = scalar_lea.sflag [#allocation5], %s135
          %s137 = sand.u32 %s39, 1
          %s138 = smul.addr %s137, 8
          %s139 = scalar_lea.vmem [#allocation4], %s138
          %s141 = ssub.s32 128, 128
          %142 = vsyncadd %s136, %s141
          %s143 = smul.addr %s23, 2
          %s144 = smul.addr %s22, 2
          %s145 = sadd.s32 %s143, %s144
          %s146 = smul.addr %s145, 64
          %s147 = scalar_lea.hbm %s0, %s146
          %s149 = sshll.u32 %s139, 4
          %s150 = int_to_ptr.vmem [resolvable:$true] %s149
          %152 = dma.hbm_to_vmem [thread:$0]  %s147, 128, %s150, %s136
        $region24: #{tpu_custom_call.1} parent=19 // pred_fallthru
          _
      $region20: #{tpu_custom_call.1} parent=5 // pred_fallthru
        _
      %p153 = scmp.le.s32.totalorder 1, %s15
      %p154 = scmp.lt.s32.totalorder %s15, 3
      %p155 = pnand %p153, %p154
      %p156 = pneg %p155
      // Predicated region
      $region25: #{tpu_custom_call.1} parent=5 // pred_check
        _
      $region26: #{tpu_custom_call.1} parent=5 // pred_check_branch
        %158 = sbr.rel (%p155) target = $region28
      $region27: #{tpu_custom_call.1} parent=5 // pred_region
        %s159 = ssub.s32 %s15, 1
        %s160 = sand.u32 %s42, 1
        %s161 = scalar_lea.sflag [#allocation5], %s160
        %s162 = sand.u32 %s42, 1
        %s163 = smul.addr %s162, 8
        %s164 = scalar_lea.vmem [#allocation4], %s163
        // Predicated region
        $region29: #{tpu_custom_call.1} parent=27 // pred_check
          %p165 = pneg %p55
        $region30: #{tpu_custom_call.1} parent=27 // pred_check_branch
          %167 = sbr.rel (%p165) target = $region32
        $region31: #{tpu_custom_call.1} parent=27 // pred_region
          %168 = dma.done %s161, 128
        $region32: #{tpu_custom_call.1} parent=27 // pred_fallthru
          _
        // Predicated region
        $region33: #{tpu_custom_call.1} parent=27 // pred_check
          %p169 = pneg %p76
        $region34: #{tpu_custom_call.1} parent=27 // pred_check_branch
          %171 = sbr.rel (%p169) target = $region36
        $region35: #{tpu_custom_call.1} parent=27 // pred_region
          %172 = dma.done [#allocation7], 16
        $region36: #{tpu_custom_call.1} parent=27 // pred_fallthru
          _
        %173 = sfence
        %s174 = sand.u32 %s42, 1
        %s175 = scalar_lea.sflag [#allocation5], %s174
        %s176 = sand.u32 %s42, 1
        %s177 = smul.addr %s176, 8
        %s178 = scalar_lea.vmem [#allocation4], %s177
        %p179 = pneg %p55
        %p180 = pneg %p52
        %p181 = pneg %p76
        %p182 = pneg %p73
        %p183 = pneg %p102
        %p184 = pneg %p99
        %s185 = sand.u32 %s89, 1
        %s186 = scalar_lea.sflag [#allocation6], %s185
        %s187 = sand.u32 %s89, 1
        %s188 = smul.addr %s187, 2
        %s189 = scalar_lea.vmem [#allocation9], %s188
        %p190 = scmp.eq.s32.totalorder %s25, 0
        // Predicated region
        $region37: #{tpu_custom_call.1} parent=27 // pred_check
          %p191 = pneg %p190
        $region38: #{tpu_custom_call.1} parent=27 // pred_check_branch
          %193 = sbr.rel (%p191) target = $region40
        $region39: #{tpu_custom_call.1} parent=27 // pred_region
          %194 = vst [vmem:[#allocation2] sm:$0xff] 0.0
          %195 = vst [vmem:[#allocation2 + $0x8] sm:$0xff] 0.0
          %196 = vst [vmem:[#allocation3] sm:$0xff] -inf
          %197 = vst [vmem:[#allocation3 + $0x8] sm:$0xff] -inf
        $region40: #{tpu_custom_call.1} parent=27 // pred_fallthru
          _
        %v198 = vld [vmem:[%s164] sm:$0xff]
        %v200 = vcombine.high %v198, %v198
        %vm202 = vcmask 1043456
        %v203 = vsel %vm202, %v198, 0.0
        %v204 = vsel %vm202, %v200, 0.0
        %v205 = vsel %vm202, %v198, -inf
        %v206 = vsel %vm202, %v200, -inf
        %v207 = vld [vmem:[#allocation2] sm:$0xff]
        %v208 = vld [vmem:[#allocation2 + $0x8] sm:$0xff]
        %v209 = vadd.f32 %v203, 0.0
        %v210 = vadd.f32 %v204, 0.0
        %v211 = vadd.f32 %v207, %v209
        %v212 = vadd.f32 %v208, %v210
        %213 = vst [vmem:[#allocation2] sm:$0xff] %v211
        %214 = vst [vmem:[#allocation2 + $0x8] sm:$0xff] %v212
        %v215 = vld [vmem:[#allocation3] sm:$0xff]
        %v216 = vld [vmem:[#allocation3 + $0x8] sm:$0xff]
        %v217 = vmax.f32 %v215, %v205
        %v218 = vmax.f32 %v216, %v206
        %219 = vst [vmem:[#allocation3] sm:$0xff] %v217
        %220 = vst [vmem:[#allocation3 + $0x8] sm:$0xff] %v218
        // Predicated region
        $region41: #{tpu_custom_call.1} parent=27 // pred_check
          %p221 = pneg %p190
        $region42: #{tpu_custom_call.1} parent=27 // pred_check_branch
          %223 = sbr.rel (%p221) target = $region44
        $region43: #{tpu_custom_call.1} parent=27 // pred_region
          %v224 = vld [vmem:[#allocation2] sm:$0xff]
          %v225 = vld [vmem:[#allocation2 + $0x8] sm:$0xff]
          %v226 = vrot.slane %v224, 4
          %v227 = vadd.f32 %v224, %v226
          %v228 = vrot.slane %v227, 2
          %v229 = vadd.f32 %v227, %v228
          %v230 = vrot.slane %v229, 1
          %v231 = vadd.f32 %v229, %v230
          %v232 = vrot.slane %v225, 4
          %v233 = vadd.f32 %v225, %v232
          %v234 = vrot.slane %v233, 2
          %v235 = vadd.f32 %v233, %v234
          %v236 = vrot.slane %v235, 1
          %v237 = vadd.f32 %v235, %v236
          %v238 = vld [vmem:[#allocation3] sm:$0xff]
          %v239 = vld [vmem:[#allocation3 + $0x8] sm:$0xff]
          %v240 = vrot.slane %v238, 4
          %v241 = vmax.f32 %v238, %v240
          %v242 = vrot.slane %v241, 2
          %v243 = vmax.f32 %v241, %v242
          %v244 = vrot.slane %v243, 1
          %v245 = vmax.f32 %v243, %v244
          %v246 = vrot.slane %v239, 4
          %v247 = vmax.f32 %v239, %v246
          %v248 = vrot.slane %v247, 2
          %v249 = vmax.f32 %v247, %v248
          %v250 = vrot.slane %v249, 1
          %v251 = vmax.f32 %v249, %v250
          %vm252 = vcmask 1040384
          %v253 = vsel %vm252, %v231, %v245
          %v254 = vsel %vm252, %v237, %v251
          %257 = vrot.lane.b32.xlu0 %v253, 51
          %v258 = vpop.permute.xlu0 %257
          %259 = vrot.lane.b32.xlu0 %v254, 51
          %v260 = vpop.permute.xlu0 %259
          %vm261 = vcmask 416768
          %v262 = vsel %vm261, %v258, %v260
          %v266 = vsel %vm261, 0.0, %v258
          %v267 = vsel %vm261, %v260, 0.0
          %v268 = vlaneseq
          %v269 = vand.u32 %v268, 127
          %v270 = vadd.s32 %v269, 128
          %vm271 = vcmp.lt.s32.totalorder %v269, 0
          %v272 = vsub.s32 0, %v269
          %v273 = vsel %vm271, %v272, %v269
          %v274 = vshrl.u32 %v273, 4
          %v275 = vand.u32 %v273, 15
          %v276 = vsub.s32 0, %v275
          %v277 = vsel %vm271, %v276, %v275
          %vm278 = vcmp.lt.s32.totalorder %v270, 0
          %v279 = vsub.s32 0, %v270
          %v280 = vsel %vm278, %v279, %v270
          %v281 = vshrl.u32 %v280, 4
          %v282 = vand.u32 %v280, 15
          %v283 = vsub.s32 0, %v282
          %v284 = vsel %vm278, %v283, %v282
          %vm285 = vcmp.ne.s32.totalorder %v277, 0
          %vm286 = vcmp.ne.s32.totalorder %v284, 0
          %vm287 = vcmp.lt.s32.totalorder %v277, 0
          %vm288 = vcmp.lt.s32.totalorder %v284, 0
          %vm289 = vmand %vm287, %vm285
          %vm290 = vmand %vm288, %vm286
          %v291 = vadd.s32 %v277, 16
          %v292 = vadd.s32 %v284, 16
          %v293 = vsel %vm289, %v291, %v277
          %v294 = vsel %vm290, %v292, %v284
          %vm295 = vcmp.ge.s32.totalorder %v293, 3
          %vm296 = vcmp.ge.s32.totalorder %v294, 3
          %vm297 = vcmp.ge.s32.totalorder %v293, 2
          %vm298 = vcmp.ge.s32.totalorder %v294, 2
          %vm299 = vcmp.ge.s32.totalorder %v293, 1
          %vm300 = vcmp.ge.s32.totalorder %v294, 1
          %vm301 = vcmp.lt.s32.totalorder %v293, 15
          %vm302 = vcmp.lt.s32.totalorder %v294, 15
          %vm303 = vcmp.lt.s32.totalorder %v293, 14
          %vm304 = vcmp.lt.s32.totalorder %v294, 14
          %vm305 = vcmp.lt.s32.totalorder %v293, 13
          %vm306 = vcmp.lt.s32.totalorder %v294, 13
          %v307 = vlaneseq
          %v308 = vshrl.u32 %v307, 7
          %vm309 = vcmp.eq.s32.totalorder %v308, 0
          %s310 = sld [smem:[#allocation8]]
          %s311 = sld [smem:[#allocation8 + $0x31]]
          %v312 = vstv %s310
          %v313 = vstv %s311
          %v314 = vsel %vm309, %v312, %v313
          %v315 = vsel %vm295, 1, 0
          %v316 = vsel %vm296, 1, 0
          %vm317 = vcmp.eq.s32.totalorder %v315, 1
          %vm318 = vcmp.eq.s32.totalorder %v316, 1
          %v319 = vsel %vm317, %v266, 0.0
          %v320 = vsel %vm318, %v262, 0.0
          %v321 = vmul.f32 %v314, %v319
          %v322 = vmul.f32 %v314, %v320
          %v323 = vadd.f32 %v321, 0.0
          %v324 = vadd.f32 %v322, 0.0
          %s325 = sld [smem:[#allocation8 + $0x1]]
          %s326 = sld [smem:[#allocation8 + $0x32]]
          %v327 = vstv %s325
          %v328 = vstv %s326
          %v329 = vsel %vm309, %v327, %v328
          %v330 = vsel %vm297, 1, 0
          %v331 = vsel %vm298, 1, 0
          %vm332 = vcmp.eq.s32.totalorder %v330, 1
          %vm333 = vcmp.eq.s32.totalorder %v331, 1
          %336 = vrot.lane.b32.xlu0 %v266, 127
          %v337 = vpop.permute.xlu0 %336
          %338 = vrot.lane.b32.xlu0 %v262, 127
          %v339 = vpop.permute.xlu0 %338
          %340 = vrot.lane.b32.xlu0 %v267, 127
          %v341 = vpop.permute.xlu0 %340
          %vm342 = vcmask 1039360
          %v343 = vsel %vm342, %v337, %v339
          %v344 = vsel %vm342, %v339, %v341
          %v347 = vsel %vm332, %v343, 0.0
          %v348 = vsel %vm333, %v344, 0.0
          %v349 = vmul.f32 %v329, %v347
          %v350 = vmul.f32 %v329, %v348
          %v351 = vadd.f32 %v323, %v349
          %v352 = vadd.f32 %v324, %v350
          %s353 = sld [smem:[#allocation8 + $0x2]]
          %s354 = sld [smem:[#allocation8 + $0x33]]
          %v355 = vstv %s353
          %v356 = vstv %s354
          %v357 = vsel %vm309, %v355, %v356
          %v358 = vsel %vm299, 1, 0
          %v359 = vsel %vm300, 1, 0
          %vm360 = vcmp.eq.s32.totalorder %v358, 1
          %vm361 = vcmp.eq.s32.totalorder %v359, 1
          %362 = vrot.lane.b32.xlu0 %v266, 126
          %v363 = vpop.permute.xlu0 %362
          %364 = vrot.lane.b32.xlu0 %v262, 126
          %v365 = vpop.permute.xlu0 %364
          %366 = vrot.lane.b32.xlu0 %v267, 126
          %v367 = vpop.permute.xlu0 %366
          %vm368 = vcmask 1031168
          %v369 = vsel %vm368, %v363, %v365
          %v370 = vsel %vm368, %v365, %v367
          %v373 = vsel %vm360, %v369, 0.0
          %v374 = vsel %vm361, %v370, 0.0
          %v375 = vmul.f32 %v357, %v373
          %v376 = vmul.f32 %v357, %v374
          %v377 = vadd.f32 %v351, %v375
          %v378 = vadd.f32 %v352, %v376
          %s379 = sld [smem:[#allocation8 + $0x3]]
          %s380 = sld [smem:[#allocation8 + $0x34]]
          %v381 = vstv %s379
          %v382 = vstv %s380
          %v383 = vsel %vm309, %v381, %v382
          %v384 = vmul.f32 %v383, %v266
          %v385 = vmul.f32 %v383, %v262
          %v386 = vmul.f32 %v383, %v267
          %390 = vrot.lane.b32.xlu0 %v384, 125
          %v391 = vpop.permute.xlu0 %390
          %392 = vrot.lane.b32.xlu0 %v385, 125
          %v393 = vpop.permute.xlu0 %392
          %394 = vrot.lane.b32.xlu0 %v386, 125
          %v395 = vpop.permute.xlu0 %394
          %vm396 = vcmask 1022976
          %v397 = vsel %vm396, %v391, %v393
          %v398 = vsel %vm396, %v393, %v395
          %v401 = vadd.f32 %v377, %v397
          %v402 = vadd.f32 %v378, %v398
          %s403 = sld [smem:[#allocation8 + $0x4]]
          %s404 = sld [smem:[#allocation8 + $0x35]]
          %v405 = vstv %s403
          %v406 = vstv %s404
          %v407 = vsel %vm309, %v405, %v406
          %v408 = vsel %vm301, 1, 0
          %v409 = vsel %vm302, 1, 0
          %vm410 = vcmp.eq.s32.totalorder %v408, 1
          %vm411 = vcmp.eq.s32.totalorder %v409, 1
          %412 = vrot.lane.b32.xlu0 %v266, 124
          %v413 = vpop.permute.xlu0 %412
          %414 = vrot.lane.b32.xlu0 %v262, 124
          %v415 = vpop.permute.xlu0 %414
          %416 = vrot.lane.b32.xlu0 %v267, 124
          %v417 = vpop.permute.xlu0 %416
          %vm418 = vcmask 1014784
          %v419 = vsel %vm418, %v413, %v415
          %v420 = vsel %vm418, %v415, %v417
          %v423 = vsel %vm410, %v419, 0.0
          %v424 = vsel %vm411, %v420, 0.0
          %v425 = vmul.f32 %v407, %v423
          %v426 = vmul.f32 %v407, %v424
          %v427 = vadd.f32 %v401, %v425
          %v428 = vadd.f32 %v402, %v426
          %s429 = sld [smem:[#allocation8 + $0x5]]
          %s430 = sld [smem:[#allocation8 + $0x36]]
          %v431 = vstv %s429
          %v432 = vstv %s430
          %v433 = vsel %vm309, %v431, %v432
          %v434 = vsel %vm303, 1, 0
          %v435 = vsel %vm304, 1, 0
          %vm436 = vcmp.eq.s32.totalorder %v434, 1
          %vm437 = vcmp.eq.s32.totalorder %v435, 1
          %438 = vrot.lane.b32.xlu0 %v266, 123
          %v439 = vpop.permute.xlu0 %438
          %440 = vrot.lane.b32.xlu0 %v262, 123
          %v441 = vpop.permute.xlu0 %440
          %442 = vrot.lane.b32.xlu0 %v267, 123
          %v443 = vpop.permute.xlu0 %442
          %vm444 = vcmask 1006592
          %v445 = vsel %vm444, %v439, %v441
          %v446 = vsel %vm444, %v441, %v443
          %v449 = vsel %vm436, %v445, 0.0
          %v450 = vsel %vm437, %v446, 0.0
          %v451 = vmul.f32 %v433, %v449
          %v452 = vmul.f32 %v433, %v450
          %v453 = vadd.f32 %v427, %v451
          %v454 = vadd.f32 %v428, %v452
          %s455 = sld [smem:[#allocation8 + $0x6]]
          %s456 = sld [smem:[#allocation8 + $0x37]]
          %v457 = vstv %s455
          %v458 = vstv %s456
          %v459 = vsel %vm309, %v457, %v458
          %v460 = vsel %vm305, 1, 0
          %v461 = vsel %vm306, 1, 0
          %vm462 = vcmp.eq.s32.totalorder %v460, 1
          %vm463 = vcmp.eq.s32.totalorder %v461, 1
          %464 = vrot.lane.b32.xlu0 %v266, 122
          %v465 = vpop.permute.xlu0 %464
          %466 = vrot.lane.b32.xlu0 %v262, 122
          %v467 = vpop.permute.xlu0 %466
          %468 = vrot.lane.b32.xlu0 %v267, 122
          %v469 = vpop.permute.xlu0 %468
          %vm470 = vcmask 998400
          %v471 = vsel %vm470, %v465, %v467
          %v472 = vsel %vm470, %v467, %v469
          %v475 = vsel %vm462, %v471, 0.0
          %v476 = vsel %vm463, %v472, 0.0
          %v477 = vmul.f32 %v459, %v475
          %v478 = vmul.f32 %v459, %v476
          %v479 = vadd.f32 %v453, %v477
          %v480 = vadd.f32 %v454, %v478
          %s481 = sld [smem:[#allocation8 + $0x7]]
          %s482 = sld [smem:[#allocation8 + $0x38]]
          %v483 = vstv %s481
          %v484 = vstv %s482
          %v485 = vsel %vm309, %v483, %v484
          %486 = vrot.lane.b32.xlu0 %v266, 112
          %v487 = vpop.permute.xlu0 %486
          %488 = vrot.lane.b32.xlu0 %v262, 112
          %v489 = vpop.permute.xlu0 %488
          %490 = vrot.lane.b32.xlu0 %v267, 112
          %v491 = vpop.permute.xlu0 %490
          %vm492 = vcmask 916480
          %v493 = vsel %vm492, %v487, %v489
          %v494 = vsel %vm492, %v489, %v491
          %v497 = vsel %vm317, %v493, 0.0
          %v498 = vsel %vm318, %v494, 0.0
          %v499 = vmul.f32 %v485, %v497
          %v500 = vmul.f32 %v485, %v498
          %v501 = vadd.f32 %v479, %v499
          %v502 = vadd.f32 %v480, %v500
          %s503 = sld [smem:[#allocation8 + $0x8]]
          %s504 = sld [smem:[#allocation8 + $0x39]]
          %v505 = vstv %s503
          %v506 = vstv %s504
          %v507 = vsel %vm309, %v505, %v506
          %508 = vrot.lane.b32.xlu0 %v266, 111
          %v509 = vpop.permute.xlu0 %508
          %510 = vrot.lane.b32.xlu0 %v262, 111
          %v511 = vpop.permute.xlu0 %510
          %512 = vrot.lane.b32.xlu0 %v267, 111
          %v513 = vpop.permute.xlu0 %512
          %vm514 = vcmask 908288
          %v515 = vsel %vm514, %v509, %v511
          %v516 = vsel %vm514, %v511, %v513
          %v519 = vsel %vm332, %v515, 0.0
          %v520 = vsel %vm333, %v516, 0.0
          %v521 = vmul.f32 %v507, %v519
          %v522 = vmul.f32 %v507, %v520
          %v523 = vadd.f32 %v501, %v521
          %v524 = vadd.f32 %v502, %v522
          %s525 = sld [smem:[#allocation8 + $0x9]]
          %s526 = sld [smem:[#allocation8 + $0x3a]]
          %v527 = vstv %s525
          %v528 = vstv %s526
          %v529 = vsel %vm309, %v527, %v528
          %530 = vrot.lane.b32.xlu0 %v266, 110
          %v531 = vpop.permute.xlu0 %530
          %532 = vrot.lane.b32.xlu0 %v262, 110
          %v533 = vpop.permute.xlu0 %532
          %534 = vrot.lane.b32.xlu0 %v267, 110
          %v535 = vpop.permute.xlu0 %534
          %vm536 = vcmask 900096
          %v537 = vsel %vm536, %v531, %v533
          %v538 = vsel %vm536, %v533, %v535
          %v541 = vsel %vm360, %v537, 0.0
          %v542 = vsel %vm361, %v538, 0.0
          %v543 = vmul.f32 %v529, %v541
          %v544 = vmul.f32 %v529, %v542
          %v545 = vadd.f32 %v523, %v543
          %v546 = vadd.f32 %v524, %v544
          %s547 = sld [smem:[#allocation8 + $0xa]]
          %s548 = sld [smem:[#allocation8 + $0x3b]]
          %v549 = vstv %s547
          %v550 = vstv %s548
          %v551 = vsel %vm309, %v549, %v550
          %v552 = vmul.f32 %v551, %v266
          %v553 = vmul.f32 %v551, %v262
          %v554 = vmul.f32 %v551, %v267
          %558 = vrot.lane.b32.xlu0 %v552, 109
          %v559 = vpop.permute.xlu0 %558
          %560 = vrot.lane.b32.xlu0 %v553, 109
          %v561 = vpop.permute.xlu0 %560
          %562 = vrot.lane.b32.xlu0 %v554, 109
          %v563 = vpop.permute.xlu0 %562
          %vm564 = vcmask 891904
          %v565 = vsel %vm564, %v559, %v561
          %v566 = vsel %vm564, %v561, %v563
          %v569 = vadd.f32 %v545, %v565
          %v570 = vadd.f32 %v546, %v566
          %s571 = sld [smem:[#allocation8 + $0xb]]
          %s572 = sld [smem:[#allocation8 + $0x3c]]
          %v573 = vstv %s571
          %v574 = vstv %s572
          %v575 = vsel %vm309, %v573, %v574
          %576 = vrot.lane.b32.xlu0 %v266, 108
          %v577 = vpop.permute.xlu0 %576
          %578 = vrot.lane.b32.xlu0 %v262, 108
          %v579 = vpop.permute.xlu0 %578
          %580 = vrot.lane.b32.xlu0 %v267, 108
          %v581 = vpop.permute.xlu0 %580
          %vm582 = vcmask 883712
          %v583 = vsel %vm582, %v577, %v579
          %v584 = vsel %vm582, %v579, %v581
          %v587 = vsel %vm410, %v583, 0.0
          %v588 = vsel %vm411, %v584, 0.0
          %v589 = vmul.f32 %v575, %v587
          %v590 = vmul.f32 %v575, %v588
          %v591 = vadd.f32 %v569, %v589
          %v592 = vadd.f32 %v570, %v590
          %s593 = sld [smem:[#allocation8 + $0xc]]
          %s594 = sld [smem:[#allocation8 + $0x3d]]
          %v595 = vstv %s593
          %v596 = vstv %s594
          %v597 = vsel %vm309, %v595, %v596
          %598 = vrot.lane.b32.xlu0 %v266, 107
          %v599 = vpop.permute.xlu0 %598
          %600 = vrot.lane.b32.xlu0 %v262, 107
          %v601 = vpop.permute.xlu0 %600
          %602 = vrot.lane.b32.xlu0 %v267, 107
          %v603 = vpop.permute.xlu0 %602
          %vm604 = vcmask 875520
          %v605 = vsel %vm604, %v599, %v601
          %v606 = vsel %vm604, %v601, %v603
          %v609 = vsel %vm436, %v605, 0.0
          %v610 = vsel %vm437, %v606, 0.0
          %v611 = vmul.f32 %v597, %v609
          %v612 = vmul.f32 %v597, %v610
          %v613 = vadd.f32 %v591, %v611
          %v614 = vadd.f32 %v592, %v612
          %s615 = sld [smem:[#allocation8 + $0xd]]
          %s616 = sld [smem:[#allocation8 + $0x3e]]
          %v617 = vstv %s615
          %v618 = vstv %s616
          %v619 = vsel %vm309, %v617, %v618
          %620 = vrot.lane.b32.xlu0 %v266, 106
          %v621 = vpop.permute.xlu0 %620
          %622 = vrot.lane.b32.xlu0 %v262, 106
          %v623 = vpop.permute.xlu0 %622
          %624 = vrot.lane.b32.xlu0 %v267, 106
          %v625 = vpop.permute.xlu0 %624
          %vm626 = vcmask 867328
          %v627 = vsel %vm626, %v621, %v623
          %v628 = vsel %vm626, %v623, %v625
          %v631 = vsel %vm462, %v627, 0.0
          %v632 = vsel %vm463, %v628, 0.0
          %v633 = vmul.f32 %v619, %v631
          %v634 = vmul.f32 %v619, %v632
          %v635 = vadd.f32 %v613, %v633
          %v636 = vadd.f32 %v614, %v634
          %s637 = sld [smem:[#allocation8 + $0xe]]
          %s638 = sld [smem:[#allocation8 + $0x3f]]
          %v639 = vstv %s637
          %v640 = vstv %s638
          %v641 = vsel %vm309, %v639, %v640
          %642 = vrot.lane.b32.xlu0 %v266, 96
          %v643 = vpop.permute.xlu0 %642
          %644 = vrot.lane.b32.xlu0 %v262, 96
          %v645 = vpop.permute.xlu0 %644
          %646 = vrot.lane.b32.xlu0 %v267, 96
          %v647 = vpop.permute.xlu0 %646
          %vm648 = vcmask 785408
          %v649 = vsel %vm648, %v643, %v645
          %v650 = vsel %vm648, %v645, %v647
          %v653 = vsel %vm317, %v649, 0.0
          %v654 = vsel %vm318, %v650, 0.0
          %v655 = vmul.f32 %v641, %v653
          %v656 = vmul.f32 %v641, %v654
          %v657 = vadd.f32 %v635, %v655
          %v658 = vadd.f32 %v636, %v656
          %s659 = sld [smem:[#allocation8 + $0xf]]
          %s660 = sld [smem:[#allocation8 + $0x40]]
          %v661 = vstv %s659
          %v662 = vstv %s660
          %v663 = vsel %vm309, %v661, %v662
          %664 = vrot.lane.b32.xlu0 %v266, 95
          %v665 = vpop.permute.xlu0 %664
          %666 = vrot.lane.b32.xlu0 %v262, 95
          %v667 = vpop.permute.xlu0 %666
          %668 = vrot.lane.b32.xlu0 %v267, 95
          %v669 = vpop.permute.xlu0 %668
          %vm670 = vcmask 777216
          %v671 = vsel %vm670, %v665, %v667
          %v672 = vsel %vm670, %v667, %v669
          %v675 = vsel %vm332, %v671, 0.0
          %v676 = vsel %vm333, %v672, 0.0
          %v677 = vmul.f32 %v663, %v675
          %v678 = vmul.f32 %v663, %v676
          %v679 = vadd.f32 %v657, %v677
          %v680 = vadd.f32 %v658, %v678
          %s681 = sld [smem:[#allocation8 + $0x10]]
          %s682 = sld [smem:[#allocation8 + $0x41]]
          %v683 = vstv %s681
          %v684 = vstv %s682
          %v685 = vsel %vm309, %v683, %v684
          %686 = vrot.lane.b32.xlu0 %v266, 94
          %v687 = vpop.permute.xlu0 %686
          %688 = vrot.lane.b32.xlu0 %v262, 94
          %v689 = vpop.permute.xlu0 %688
          %690 = vrot.lane.b32.xlu0 %v267, 94
          %v691 = vpop.permute.xlu0 %690
          %vm692 = vcmask 769024
          %v693 = vsel %vm692, %v687, %v689
          %v694 = vsel %vm692, %v689, %v691
          %v697 = vsel %vm360, %v693, 0.0
          %v698 = vsel %vm361, %v694, 0.0
          %v699 = vmul.f32 %v685, %v697
          %v700 = vmul.f32 %v685, %v698
          %v701 = vadd.f32 %v679, %v699
          %v702 = vadd.f32 %v680, %v700
          %s703 = sld [smem:[#allocation8 + $0x11]]
          %s704 = sld [smem:[#allocation8 + $0x42]]
          %v705 = vstv %s703
          %v706 = vstv %s704
          %v707 = vsel %vm309, %v705, %v706
          %v708 = vmul.f32 %v707, %v266
          %v709 = vmul.f32 %v707, %v262
          %v710 = vmul.f32 %v707, %v267
          %714 = vrot.lane.b32.xlu0 %v708, 93
          %v715 = vpop.permute.xlu0 %714
          %716 = vrot.lane.b32.xlu0 %v709, 93
          %v717 = vpop.permute.xlu0 %716
          %718 = vrot.lane.b32.xlu0 %v710, 93
          %v719 = vpop.permute.xlu0 %718
          %vm720 = vcmask 760832
          %v721 = vsel %vm720, %v715, %v717
          %v722 = vsel %vm720, %v717, %v719
          %v725 = vadd.f32 %v701, %v721
          %v726 = vadd.f32 %v702, %v722
          %s727 = sld [smem:[#allocation8 + $0x12]]
          %s728 = sld [smem:[#allocation8 + $0x43]]
          %v729 = vstv %s727
          %v730 = vstv %s728
          %v731 = vsel %vm309, %v729, %v730
          %732 = vrot.lane.b32.xlu0 %v266, 92
          %v733 = vpop.permute.xlu0 %732
          %734 = vrot.lane.b32.xlu0 %v262, 92
          %v735 = vpop.permute.xlu0 %734
          %736 = vrot.lane.b32.xlu0 %v267, 92
          %v737 = vpop.permute.xlu0 %736
          %vm738 = vcmask 752640
          %v739 = vsel %vm738, %v733, %v735
          %v740 = vsel %vm738, %v735, %v737
          %v743 = vsel %vm410, %v739, 0.0
          %v744 = vsel %vm411, %v740, 0.0
          %v745 = vmul.f32 %v731, %v743
          %v746 = vmul.f32 %v731, %v744
          %v747 = vadd.f32 %v725, %v745
          %v748 = vadd.f32 %v726, %v746
          %s749 = sld [smem:[#allocation8 + $0x13]]
          %s750 = sld [smem:[#allocation8 + $0x44]]
          %v751 = vstv %s749
          %v752 = vstv %s750
          %v753 = vsel %vm309, %v751, %v752
          %754 = vrot.lane.b32.xlu0 %v266, 91
          %v755 = vpop.permute.xlu0 %754
          %756 = vrot.lane.b32.xlu0 %v262, 91
          %v757 = vpop.permute.xlu0 %756
          %758 = vrot.lane.b32.xlu0 %v267, 91
          %v759 = vpop.permute.xlu0 %758
          %vm760 = vcmask 744448
          %v761 = vsel %vm760, %v755, %v757
          %v762 = vsel %vm760, %v757, %v759
          %v765 = vsel %vm436, %v761, 0.0
          %v766 = vsel %vm437, %v762, 0.0
          %v767 = vmul.f32 %v753, %v765
          %v768 = vmul.f32 %v753, %v766
          %v769 = vadd.f32 %v747, %v767
          %v770 = vadd.f32 %v748, %v768
          %s771 = sld [smem:[#allocation8 + $0x14]]
          %s772 = sld [smem:[#allocation8 + $0x45]]
          %v773 = vstv %s771
          %v774 = vstv %s772
          %v775 = vsel %vm309, %v773, %v774
          %776 = vrot.lane.b32.xlu0 %v266, 90
          %v777 = vpop.permute.xlu0 %776
          %778 = vrot.lane.b32.xlu0 %v262, 90
          %v779 = vpop.permute.xlu0 %778
          %780 = vrot.lane.b32.xlu0 %v267, 90
          %v781 = vpop.permute.xlu0 %780
          %vm782 = vcmask 736256
          %v783 = vsel %vm782, %v777, %v779
          %v784 = vsel %vm782, %v779, %v781
          %v787 = vsel %vm462, %v783, 0.0
          %v788 = vsel %vm463, %v784, 0.0
          %v789 = vmul.f32 %v775, %v787
          %v790 = vmul.f32 %v775, %v788
          %v791 = vadd.f32 %v769, %v789
          %v792 = vadd.f32 %v770, %v790
          %s793 = sld [smem:[#allocation8 + $0x15]]
          %s794 = sld [smem:[#allocation8 + $0x46]]
          %v795 = vstv %s793
          %v796 = vstv %s794
          %v797 = vsel %vm309, %v795, %v796
          %798 = vrot.lane.b32.xlu0 %v266, 80
          %v799 = vpop.permute.xlu0 %798
          %800 = vrot.lane.b32.xlu0 %v262, 80
          %v801 = vpop.permute.xlu0 %800
          %802 = vrot.lane.b32.xlu0 %v267, 80
          %v803 = vpop.permute.xlu0 %802
          %vm804 = vcmask 654336
          %v805 = vsel %vm804, %v799, %v801
          %v806 = vsel %vm804, %v801, %v803
          %v809 = vsel %vm317, %v805, 0.0
          %v810 = vsel %vm318, %v806, 0.0
          %v811 = vmul.f32 %v797, %v809
          %v812 = vmul.f32 %v797, %v810
          %v813 = vadd.f32 %v791, %v811
          %v814 = vadd.f32 %v792, %v812
          %s815 = sld [smem:[#allocation8 + $0x16]]
          %s816 = sld [smem:[#allocation8 + $0x47]]
          %v817 = vstv %s815
          %v818 = vstv %s816
          %v819 = vsel %vm309, %v817, %v818
          %820 = vrot.lane.b32.xlu0 %v266, 79
          %v821 = vpop.permute.xlu0 %820
          %822 = vrot.lane.b32.xlu0 %v262, 79
          %v823 = vpop.permute.xlu0 %822
          %824 = vrot.lane.b32.xlu0 %v267, 79
          %v825 = vpop.permute.xlu0 %824
          %vm826 = vcmask 646144
          %v827 = vsel %vm826, %v821, %v823
          %v828 = vsel %vm826, %v823, %v825
          %v831 = vsel %vm332, %v827, 0.0
          %v832 = vsel %vm333, %v828, 0.0
          %v833 = vmul.f32 %v819, %v831
          %v834 = vmul.f32 %v819, %v832
          %v835 = vadd.f32 %v813, %v833
          %v836 = vadd.f32 %v814, %v834
          %s837 = sld [smem:[#allocation8 + $0x17]]
          %s838 = sld [smem:[#allocation8 + $0x48]]
          %v839 = vstv %s837
          %v840 = vstv %s838
          %v841 = vsel %vm309, %v839, %v840
          %842 = vrot.lane.b32.xlu0 %v266, 78
          %v843 = vpop.permute.xlu0 %842
          %844 = vrot.lane.b32.xlu0 %v262, 78
          %v845 = vpop.permute.xlu0 %844
          %846 = vrot.lane.b32.xlu0 %v267, 78
          %v847 = vpop.permute.xlu0 %846
          %vm848 = vcmask 637952
          %v849 = vsel %vm848, %v843, %v845
          %v850 = vsel %vm848, %v845, %v847
          %v853 = vsel %vm360, %v849, 0.0
          %v854 = vsel %vm361, %v850, 0.0
          %v855 = vmul.f32 %v841, %v853
          %v856 = vmul.f32 %v841, %v854
          %v857 = vadd.f32 %v835, %v855
          %v858 = vadd.f32 %v836, %v856
          %s859 = sld [smem:[#allocation8 + $0x18]]
          %s860 = sld [smem:[#allocation8 + $0x49]]
          %v861 = vstv %s859
          %v862 = vstv %s860
          %v863 = vsel %vm309, %v861, %v862
          %v864 = vmul.f32 %v863, %v266
          %v865 = vmul.f32 %v863, %v262
          %v866 = vmul.f32 %v863, %v267
          %870 = vrot.lane.b32.xlu0 %v864, 77
          %v871 = vpop.permute.xlu0 %870
          %872 = vrot.lane.b32.xlu0 %v865, 77
          %v873 = vpop.permute.xlu0 %872
          %874 = vrot.lane.b32.xlu0 %v866, 77
          %v875 = vpop.permute.xlu0 %874
          %vm876 = vcmask 629760
          %v877 = vsel %vm876, %v871, %v873
          %v878 = vsel %vm876, %v873, %v875
          %v881 = vadd.f32 %v857, %v877
          %v882 = vadd.f32 %v858, %v878
          %s883 = sld [smem:[#allocation8 + $0x19]]
          %s884 = sld [smem:[#allocation8 + $0x4a]]
          %v885 = vstv %s883
          %v886 = vstv %s884
          %v887 = vsel %vm309, %v885, %v886
          %888 = vrot.lane.b32.xlu0 %v266, 76
          %v889 = vpop.permute.xlu0 %888
          %890 = vrot.lane.b32.xlu0 %v262, 76
          %v891 = vpop.permute.xlu0 %890
          %892 = vrot.lane.b32.xlu0 %v267, 76
          %v893 = vpop.permute.xlu0 %892
          %vm894 = vcmask 621568
          %v895 = vsel %vm894, %v889, %v891
          %v896 = vsel %vm894, %v891, %v893
          %v899 = vsel %vm410, %v895, 0.0
          %v900 = vsel %vm411, %v896, 0.0
          %v901 = vmul.f32 %v887, %v899
          %v902 = vmul.f32 %v887, %v900
          %v903 = vadd.f32 %v881, %v901
          %v904 = vadd.f32 %v882, %v902
          %s905 = sld [smem:[#allocation8 + $0x1a]]
          %s906 = sld [smem:[#allocation8 + $0x4b]]
          %v907 = vstv %s905
          %v908 = vstv %s906
          %v909 = vsel %vm309, %v907, %v908
          %910 = vrot.lane.b32.xlu0 %v266, 75
          %v911 = vpop.permute.xlu0 %910
          %912 = vrot.lane.b32.xlu0 %v262, 75
          %v913 = vpop.permute.xlu0 %912
          %914 = vrot.lane.b32.xlu0 %v267, 75
          %v915 = vpop.permute.xlu0 %914
          %vm916 = vcmask 613376
          %v917 = vsel %vm916, %v911, %v913
          %v918 = vsel %vm916, %v913, %v915
          %v921 = vsel %vm436, %v917, 0.0
          %v922 = vsel %vm437, %v918, 0.0
          %v923 = vmul.f32 %v909, %v921
          %v924 = vmul.f32 %v909, %v922
          %v925 = vadd.f32 %v903, %v923
          %v926 = vadd.f32 %v904, %v924
          %s927 = sld [smem:[#allocation8 + $0x1b]]
          %s928 = sld [smem:[#allocation8 + $0x4c]]
          %v929 = vstv %s927
          %v930 = vstv %s928
          %v931 = vsel %vm309, %v929, %v930
          %932 = vrot.lane.b32.xlu0 %v266, 74
          %v933 = vpop.permute.xlu0 %932
          %934 = vrot.lane.b32.xlu0 %v262, 74
          %v935 = vpop.permute.xlu0 %934
          %936 = vrot.lane.b32.xlu0 %v267, 74
          %v937 = vpop.permute.xlu0 %936
          %vm938 = vcmask 605184
          %v939 = vsel %vm938, %v933, %v935
          %v940 = vsel %vm938, %v935, %v937
          %v943 = vsel %vm462, %v939, 0.0
          %v944 = vsel %vm463, %v940, 0.0
          %v945 = vmul.f32 %v931, %v943
          %v946 = vmul.f32 %v931, %v944
          %v947 = vadd.f32 %v925, %v945
          %v948 = vadd.f32 %v926, %v946
          %s949 = sld [smem:[#allocation8 + $0x1c]]
          %s950 = sld [smem:[#allocation8 + $0x4d]]
          %v951 = vstv %s949
          %v952 = vstv %s950
          %v953 = vsel %vm309, %v951, %v952
          %954 = vrot.lane.b32.xlu0 %v266, 64
          %v955 = vpop.permute.xlu0 %954
          %956 = vrot.lane.b32.xlu0 %v262, 64
          %v957 = vpop.permute.xlu0 %956
          %958 = vrot.lane.b32.xlu0 %v267, 64
          %v959 = vpop.permute.xlu0 %958
          %vm960 = vcmask 523264
          %v961 = vsel %vm960, %v955, %v957
          %v962 = vsel %vm960, %v957, %v959
          %v965 = vsel %vm317, %v961, 0.0
          %v966 = vsel %vm318, %v962, 0.0
          %v967 = vmul.f32 %v953, %v965
          %v968 = vmul.f32 %v953, %v966
          %v969 = vadd.f32 %v947, %v967
          %v970 = vadd.f32 %v948, %v968
          %s971 = sld [smem:[#allocation8 + $0x1d]]
          %s972 = sld [smem:[#allocation8 + $0x4e]]
          %v973 = vstv %s971
          %v974 = vstv %s972
          %v975 = vsel %vm309, %v973, %v974
          %976 = vrot.lane.b32.xlu0 %v266, 63
          %v977 = vpop.permute.xlu0 %976
          %978 = vrot.lane.b32.xlu0 %v262, 63
          %v979 = vpop.permute.xlu0 %978
          %980 = vrot.lane.b32.xlu0 %v267, 63
          %v981 = vpop.permute.xlu0 %980
          %vm982 = vcmask 515072
          %v983 = vsel %vm982, %v977, %v979
          %v984 = vsel %vm982, %v979, %v981
          %v987 = vsel %vm332, %v983, 0.0
          %v988 = vsel %vm333, %v984, 0.0
          %v989 = vmul.f32 %v975, %v987
          %v990 = vmul.f32 %v975, %v988
          %v991 = vadd.f32 %v969, %v989
          %v992 = vadd.f32 %v970, %v990
          %s993 = sld [smem:[#allocation8 + $0x1e]]
          %s994 = sld [smem:[#allocation8 + $0x4f]]
          %v995 = vstv %s993
          %v996 = vstv %s994
          %v997 = vsel %vm309, %v995, %v996
          %998 = vrot.lane.b32.xlu0 %v266, 62
          %v999 = vpop.permute.xlu0 %998
          %1000 = vrot.lane.b32.xlu0 %v262, 62
          %v1001 = vpop.permute.xlu0 %1000
          %1002 = vrot.lane.b32.xlu0 %v267, 62
          %v1003 = vpop.permute.xlu0 %1002
          %vm1004 = vcmask 506880
          %v1005 = vsel %vm1004, %v999, %v1001
          %v1006 = vsel %vm1004, %v1001, %v1003
          %v1009 = vsel %vm360, %v1005, 0.0
          %v1010 = vsel %vm361, %v1006, 0.0
          %v1011 = vmul.f32 %v997, %v1009
          %v1012 = vmul.f32 %v997, %v1010
          %v1013 = vadd.f32 %v991, %v1011
          %v1014 = vadd.f32 %v992, %v1012
          %s1015 = sld [smem:[#allocation8 + $0x1f]]
          %s1016 = sld [smem:[#allocation8 + $0x50]]
          %v1017 = vstv %s1015
          %v1018 = vstv %s1016
          %v1019 = vsel %vm309, %v1017, %v1018
          %v1020 = vmul.f32 %v1019, %v266
          %v1021 = vmul.f32 %v1019, %v262
          %v1022 = vmul.f32 %v1019, %v267
          %1026 = vrot.lane.b32.xlu0 %v1020, 61
          %v1027 = vpop.permute.xlu0 %1026
          %1028 = vrot.lane.b32.xlu0 %v1021, 61
          %v1029 = vpop.permute.xlu0 %1028
          %1030 = vrot.lane.b32.xlu0 %v1022, 61
          %v1031 = vpop.permute.xlu0 %1030
          %vm1032 = vcmask 498688
          %v1033 = vsel %vm1032, %v1027, %v1029
          %v1034 = vsel %vm1032, %v1029, %v1031
          %v1037 = vadd.f32 %v1013, %v1033
          %v1038 = vadd.f32 %v1014, %v1034
          %s1039 = sld [smem:[#allocation8 + $0x20]]
          %s1040 = sld [smem:[#allocation8 + $0x51]]
          %v1041 = vstv %s1039
          %v1042 = vstv %s1040
          %v1043 = vsel %vm309, %v1041, %v1042
          %1044 = vrot.lane.b32.xlu0 %v266, 60
          %v1045 = vpop.permute.xlu0 %1044
          %1046 = vrot.lane.b32.xlu0 %v262, 60
          %v1047 = vpop.permute.xlu0 %1046
          %1048 = vrot.lane.b32.xlu0 %v267, 60
          %v1049 = vpop.permute.xlu0 %1048
          %vm1050 = vcmask 490496
          %v1051 = vsel %vm1050, %v1045, %v1047
          %v1052 = vsel %vm1050, %v1047, %v1049
          %v1055 = vsel %vm410, %v1051, 0.0
          %v1056 = vsel %vm411, %v1052, 0.0
          %v1057 = vmul.f32 %v1043, %v1055
          %v1058 = vmul.f32 %v1043, %v1056
          %v1059 = vadd.f32 %v1037, %v1057
          %v1060 = vadd.f32 %v1038, %v1058
          %s1061 = sld [smem:[#allocation8 + $0x21]]
          %s1062 = sld [smem:[#allocation8 + $0x52]]
          %v1063 = vstv %s1061
          %v1064 = vstv %s1062
          %v1065 = vsel %vm309, %v1063, %v1064
          %1066 = vrot.lane.b32.xlu0 %v266, 59
          %v1067 = vpop.permute.xlu0 %1066
          %1068 = vrot.lane.b32.xlu0 %v262, 59
          %v1069 = vpop.permute.xlu0 %1068
          %1070 = vrot.lane.b32.xlu0 %v267, 59
          %v1071 = vpop.permute.xlu0 %1070
          %vm1072 = vcmask 482304
          %v1073 = vsel %vm1072, %v1067, %v1069
          %v1074 = vsel %vm1072, %v1069, %v1071
          %v1077 = vsel %vm436, %v1073, 0.0
          %v1078 = vsel %vm437, %v1074, 0.0
          %v1079 = vmul.f32 %v1065, %v1077
          %v1080 = vmul.f32 %v1065, %v1078
          %v1081 = vadd.f32 %v1059, %v1079
          %v1082 = vadd.f32 %v1060, %v1080
          %s1083 = sld [smem:[#allocation8 + $0x22]]
          %s1084 = sld [smem:[#allocation8 + $0x53]]
          %v1085 = vstv %s1083
          %v1086 = vstv %s1084
          %v1087 = vsel %vm309, %v1085, %v1086
          %1088 = vrot.lane.b32.xlu0 %v266, 58
          %v1089 = vpop.permute.xlu0 %1088
          %1090 = vrot.lane.b32.xlu0 %v262, 58
          %v1091 = vpop.permute.xlu0 %1090
          %1092 = vrot.lane.b32.xlu0 %v267, 58
          %v1093 = vpop.permute.xlu0 %1092
          %vm1094 = vcmask 474112
          %v1095 = vsel %vm1094, %v1089, %v1091
          %v1096 = vsel %vm1094, %v1091, %v1093
          %v1099 = vsel %vm462, %v1095, 0.0
          %v1100 = vsel %vm463, %v1096, 0.0
          %v1101 = vmul.f32 %v1087, %v1099
          %v1102 = vmul.f32 %v1087, %v1100
          %v1103 = vadd.f32 %v1081, %v1101
          %v1104 = vadd.f32 %v1082, %v1102
          %s1105 = sld [smem:[#allocation8 + $0x23]]
          %s1106 = sld [smem:[#allocation8 + $0x54]]
          %v1107 = vstv %s1105
          %v1108 = vstv %s1106
          %v1109 = vsel %vm309, %v1107, %v1108
          %1110 = vrot.lane.b32.xlu0 %v266, 48
          %v1111 = vpop.permute.xlu0 %1110
          %1112 = vrot.lane.b32.xlu0 %v262, 48
          %v1113 = vpop.permute.xlu0 %1112
          %1114 = vrot.lane.b32.xlu0 %v267, 48
          %v1115 = vpop.permute.xlu0 %1114
          %vm1116 = vcmask 392192
          %v1117 = vsel %vm1116, %v1111, %v1113
          %v1118 = vsel %vm1116, %v1113, %v1115
          %v1121 = vsel %vm317, %v1117, 0.0
          %v1122 = vsel %vm318, %v1118, 0.0
          %v1123 = vmul.f32 %v1109, %v1121
          %v1124 = vmul.f32 %v1109, %v1122
          %v1125 = vadd.f32 %v1103, %v1123
          %v1126 = vadd.f32 %v1104, %v1124
          %s1127 = sld [smem:[#allocation8 + $0x24]]
          %s1128 = sld [smem:[#allocation8 + $0x55]]
          %v1129 = vstv %s1127
          %v1130 = vstv %s1128
          %v1131 = vsel %vm309, %v1129, %v1130
          %1132 = vrot.lane.b32.xlu0 %v266, 47
          %v1133 = vpop.permute.xlu0 %1132
          %1134 = vrot.lane.b32.xlu0 %v262, 47
          %v1135 = vpop.permute.xlu0 %1134
          %1136 = vrot.lane.b32.xlu0 %v267, 47
          %v1137 = vpop.permute.xlu0 %1136
          %vm1138 = vcmask 384000
          %v1139 = vsel %vm1138, %v1133, %v1135
          %v1140 = vsel %vm1138, %v1135, %v1137
          %v1143 = vsel %vm332, %v1139, 0.0
          %v1144 = vsel %vm333, %v1140, 0.0
          %v1145 = vmul.f32 %v1131, %v1143
          %v1146 = vmul.f32 %v1131, %v1144
          %v1147 = vadd.f32 %v1125, %v1145
          %v1148 = vadd.f32 %v1126, %v1146
          %s1149 = sld [smem:[#allocation8 + $0x25]]
          %s1150 = sld [smem:[#allocation8 + $0x56]]
          %v1151 = vstv %s1149
          %v1152 = vstv %s1150
          %v1153 = vsel %vm309, %v1151, %v1152
          %1154 = vrot.lane.b32.xlu0 %v266, 46
          %v1155 = vpop.permute.xlu0 %1154
          %1156 = vrot.lane.b32.xlu0 %v262, 46
          %v1157 = vpop.permute.xlu0 %1156
          %1158 = vrot.lane.b32.xlu0 %v267, 46
          %v1159 = vpop.permute.xlu0 %1158
          %vm1160 = vcmask 375808
          %v1161 = vsel %vm1160, %v1155, %v1157
          %v1162 = vsel %vm1160, %v1157, %v1159
          %v1165 = vsel %vm360, %v1161, 0.0
          %v1166 = vsel %vm361, %v1162, 0.0
          %v1167 = vmul.f32 %v1153, %v1165
          %v1168 = vmul.f32 %v1153, %v1166
          %v1169 = vadd.f32 %v1147, %v1167
          %v1170 = vadd.f32 %v1148, %v1168
          %s1171 = sld [smem:[#allocation8 + $0x26]]
          %s1172 = sld [smem:[#allocation8 + $0x57]]
          %v1173 = vstv %s1171
          %v1174 = vstv %s1172
          %v1175 = vsel %vm309, %v1173, %v1174
          %v1176 = vmul.f32 %v1175, %v266
          %v1177 = vmul.f32 %v1175, %v262
          %v1178 = vmul.f32 %v1175, %v267
          %1182 = vrot.lane.b32.xlu0 %v1176, 45
          %v1183 = vpop.permute.xlu0 %1182
          %1184 = vrot.lane.b32.xlu0 %v1177, 45
          %v1185 = vpop.permute.xlu0 %1184
          %1186 = vrot.lane.b32.xlu0 %v1178, 45
          %v1187 = vpop.permute.xlu0 %1186
          %vm1188 = vcmask 367616
          %v1189 = vsel %vm1188, %v1183, %v1185
          %v1190 = vsel %vm1188, %v1185, %v1187
          %v1193 = vadd.f32 %v1169, %v1189
          %v1194 = vadd.f32 %v1170, %v1190
          %s1195 = sld [smem:[#allocation8 + $0x27]]
          %s1196 = sld [smem:[#allocation8 + $0x58]]
          %v1197 = vstv %s1195
          %v1198 = vstv %s1196
          %v1199 = vsel %vm309, %v1197, %v1198
          %1200 = vrot.lane.b32.xlu0 %v266, 44
          %v1201 = vpop.permute.xlu0 %1200
          %1202 = vrot.lane.b32.xlu0 %v262, 44
          %v1203 = vpop.permute.xlu0 %1202
          %1204 = vrot.lane.b32.xlu0 %v267, 44
          %v1205 = vpop.permute.xlu0 %1204
          %vm1206 = vcmask 359424
          %v1207 = vsel %vm1206, %v1201, %v1203
          %v1208 = vsel %vm1206, %v1203, %v1205
          %v1211 = vsel %vm410, %v1207, 0.0
          %v1212 = vsel %vm411, %v1208, 0.0
          %v1213 = vmul.f32 %v1199, %v1211
          %v1214 = vmul.f32 %v1199, %v1212
          %v1215 = vadd.f32 %v1193, %v1213
          %v1216 = vadd.f32 %v1194, %v1214
          %s1217 = sld [smem:[#allocation8 + $0x28]]
          %s1218 = sld [smem:[#allocation8 + $0x59]]
          %v1219 = vstv %s1217
          %v1220 = vstv %s1218
          %v1221 = vsel %vm309, %v1219, %v1220
          %1222 = vrot.lane.b32.xlu0 %v266, 43
          %v1223 = vpop.permute.xlu0 %1222
          %1224 = vrot.lane.b32.xlu0 %v262, 43
          %v1225 = vpop.permute.xlu0 %1224
          %1226 = vrot.lane.b32.xlu0 %v267, 43
          %v1227 = vpop.permute.xlu0 %1226
          %vm1228 = vcmask 351232
          %v1229 = vsel %vm1228, %v1223, %v1225
          %v1230 = vsel %vm1228, %v1225, %v1227
          %v1233 = vsel %vm436, %v1229, 0.0
          %v1234 = vsel %vm437, %v1230, 0.0
          %v1235 = vmul.f32 %v1221, %v1233
          %v1236 = vmul.f32 %v1221, %v1234
          %v1237 = vadd.f32 %v1215, %v1235
          %v1238 = vadd.f32 %v1216, %v1236
          %s1239 = sld [smem:[#allocation8 + $0x29]]
          %s1240 = sld [smem:[#allocation8 + $0x5a]]
          %v1241 = vstv %s1239
          %v1242 = vstv %s1240
          %v1243 = vsel %vm309, %v1241, %v1242
          %1244 = vrot.lane.b32.xlu0 %v266, 42
          %v1245 = vpop.permute.xlu0 %1244
          %1246 = vrot.lane.b32.xlu0 %v262, 42
          %v1247 = vpop.permute.xlu0 %1246
          %1248 = vrot.lane.b32.xlu0 %v267, 42
          %v1249 = vpop.permute.xlu0 %1248
          %vm1250 = vcmask 343040
          %v1251 = vsel %vm1250, %v1245, %v1247
          %v1252 = vsel %vm1250, %v1247, %v1249
          %v1255 = vsel %vm462, %v1251, 0.0
          %v1256 = vsel %vm463, %v1252, 0.0
          %v1257 = vmul.f32 %v1243, %v1255
          %v1258 = vmul.f32 %v1243, %v1256
          %v1259 = vadd.f32 %v1237, %v1257
          %v1260 = vadd.f32 %v1238, %v1258
          %s1261 = sld [smem:[#allocation8 + $0x2a]]
          %s1262 = sld [smem:[#allocation8 + $0x5b]]
          %v1263 = vstv %s1261
          %v1264 = vstv %s1262
          %v1265 = vsel %vm309, %v1263, %v1264
          %1266 = vrot.lane.b32.xlu0 %v266, 32
          %v1267 = vpop.permute.xlu0 %1266
          %1268 = vrot.lane.b32.xlu0 %v262, 32
          %v1269 = vpop.permute.xlu0 %1268
          %1270 = vrot.lane.b32.xlu0 %v267, 32
          %v1271 = vpop.permute.xlu0 %1270
          %vm1272 = vcmask 261120
          %v1273 = vsel %vm1272, %v1267, %v1269
          %v1274 = vsel %vm1272, %v1269, %v1271
          %v1277 = vsel %vm317, %v1273, 0.0
          %v1278 = vsel %vm318, %v1274, 0.0
          %v1279 = vmul.f32 %v1265, %v1277
          %v1280 = vmul.f32 %v1265, %v1278
          %v1281 = vadd.f32 %v1259, %v1279
          %v1282 = vadd.f32 %v1260, %v1280
          %s1283 = sld [smem:[#allocation8 + $0x2b]]
          %s1284 = sld [smem:[#allocation8 + $0x5c]]
          %v1285 = vstv %s1283
          %v1286 = vstv %s1284
          %v1287 = vsel %vm309, %v1285, %v1286
          %1288 = vrot.lane.b32.xlu0 %v266, 31
          %v1289 = vpop.permute.xlu0 %1288
          %1290 = vrot.lane.b32.xlu0 %v262, 31
          %v1291 = vpop.permute.xlu0 %1290
          %1292 = vrot.lane.b32.xlu0 %v267, 31
          %v1293 = vpop.permute.xlu0 %1292
          %vm1294 = vcmask 252928
          %v1295 = vsel %vm1294, %v1289, %v1291
          %v1296 = vsel %vm1294, %v1291, %v1293
          %v1299 = vsel %vm332, %v1295, 0.0
          %v1300 = vsel %vm333, %v1296, 0.0
          %v1301 = vmul.f32 %v1287, %v1299
          %v1302 = vmul.f32 %v1287, %v1300
          %v1303 = vadd.f32 %v1281, %v1301
          %v1304 = vadd.f32 %v1282, %v1302
          %s1305 = sld [smem:[#allocation8 + $0x2c]]
          %s1306 = sld [smem:[#allocation8 + $0x5d]]
          %v1307 = vstv %s1305
          %v1308 = vstv %s1306
          %v1309 = vsel %vm309, %v1307, %v1308
          %1310 = vrot.lane.b32.xlu0 %v266, 30
          %v1311 = vpop.permute.xlu0 %1310
          %1312 = vrot.lane.b32.xlu0 %v262, 30
          %v1313 = vpop.permute.xlu0 %1312
          %1314 = vrot.lane.b32.xlu0 %v267, 30
          %v1315 = vpop.permute.xlu0 %1314
          %vm1316 = vcmask 244736
          %v1317 = vsel %vm1316, %v1311, %v1313
          %v1318 = vsel %vm1316, %v1313, %v1315
          %v1321 = vsel %vm360, %v1317, 0.0
          %v1322 = vsel %vm361, %v1318, 0.0
          %v1323 = vmul.f32 %v1309, %v1321
          %v1324 = vmul.f32 %v1309, %v1322
          %v1325 = vadd.f32 %v1303, %v1323
          %v1326 = vadd.f32 %v1304, %v1324
          %s1327 = sld [smem:[#allocation8 + $0x2d]]
          %s1328 = sld [smem:[#allocation8 + $0x5e]]
          %v1329 = vstv %s1327
          %v1330 = vstv %s1328
          %v1331 = vsel %vm309, %v1329, %v1330
          %v1332 = vmul.f32 %v1331, %v266
          %v1333 = vmul.f32 %v1331, %v262
          %v1334 = vmul.f32 %v1331, %v267
          %1338 = vrot.lane.b32.xlu0 %v1332, 29
          %v1339 = vpop.permute.xlu0 %1338
          %1340 = vrot.lane.b32.xlu0 %v1333, 29
          %v1341 = vpop.permute.xlu0 %1340
          %1342 = vrot.lane.b32.xlu0 %v1334, 29
          %v1343 = vpop.permute.xlu0 %1342
          %vm1344 = vcmask 236544
          %v1345 = vsel %vm1344, %v1339, %v1341
          %v1346 = vsel %vm1344, %v1341, %v1343
          %v1349 = vadd.f32 %v1325, %v1345
          %v1350 = vadd.f32 %v1326, %v1346
          %s1351 = sld [smem:[#allocation8 + $0x2e]]
          %s1352 = sld [smem:[#allocation8 + $0x5f]]
          %v1353 = vstv %s1351
          %v1354 = vstv %s1352
          %v1355 = vsel %vm309, %v1353, %v1354
          %1356 = vrot.lane.b32.xlu0 %v266, 28
          %v1357 = vpop.permute.xlu0 %1356
          %1358 = vrot.lane.b32.xlu0 %v262, 28
          %v1359 = vpop.permute.xlu0 %1358
          %1360 = vrot.lane.b32.xlu0 %v267, 28
          %v1361 = vpop.permute.xlu0 %1360
          %vm1362 = vcmask 228352
          %v1363 = vsel %vm1362, %v1357, %v1359
          %v1364 = vsel %vm1362, %v1359, %v1361
          %v1367 = vsel %vm410, %v1363, 0.0
          %v1368 = vsel %vm411, %v1364, 0.0
          %v1369 = vmul.f32 %v1355, %v1367
          %v1370 = vmul.f32 %v1355, %v1368
          %v1371 = vadd.f32 %v1349, %v1369
          %v1372 = vadd.f32 %v1350, %v1370
          %s1373 = sld [smem:[#allocation8 + $0x2f]]
          %s1374 = sld [smem:[#allocation8 + $0x60]]
          %v1375 = vstv %s1373
          %v1376 = vstv %s1374
          %v1377 = vsel %vm309, %v1375, %v1376
          %1378 = vrot.lane.b32.xlu0 %v266, 27
          %v1379 = vpop.permute.xlu0 %1378
          %1380 = vrot.lane.b32.xlu0 %v262, 27
          %v1381 = vpop.permute.xlu0 %1380
          %1382 = vrot.lane.b32.xlu0 %v267, 27
          %v1383 = vpop.permute.xlu0 %1382
          %vm1384 = vcmask 220160
          %v1385 = vsel %vm1384, %v1379, %v1381
          %v1386 = vsel %vm1384, %v1381, %v1383
          %v1389 = vsel %vm436, %v1385, 0.0
          %v1390 = vsel %vm437, %v1386, 0.0
          %v1391 = vmul.f32 %v1377, %v1389
          %v1392 = vmul.f32 %v1377, %v1390
          %v1393 = vadd.f32 %v1371, %v1391
          %v1394 = vadd.f32 %v1372, %v1392
          %s1395 = sld [smem:[#allocation8 + $0x30]]
          %s1396 = sld [smem:[#allocation8 + $0x61]]
          %v1397 = vstv %s1395
          %v1398 = vstv %s1396
          %v1399 = vsel %vm309, %v1397, %v1398
          %1400 = vrot.lane.b32.xlu0 %v266, 26
          %v1401 = vpop.permute.xlu0 %1400
          %1402 = vrot.lane.b32.xlu0 %v262, 26
          %v1403 = vpop.permute.xlu0 %1402
          %1404 = vrot.lane.b32.xlu0 %v267, 26
          %v1405 = vpop.permute.xlu0 %1404
          %vm1406 = vcmask 211968
          %v1407 = vsel %vm1406, %v1401, %v1403
          %v1408 = vsel %vm1406, %v1403, %v1405
          %v1411 = vsel %vm462, %v1407, 0.0
          %v1412 = vsel %vm463, %v1408, 0.0
          %v1413 = vmul.f32 %v1399, %v1411
          %v1414 = vmul.f32 %v1399, %v1412
          %v1415 = vadd.f32 %v1393, %v1413
          %v1416 = vadd.f32 %v1394, %v1414
          %vm1417 = vcmask 1041408
          %v1418 = vsel %vm1417, %v1415, 0.0
          %v1419 = vrot.slane %v1418, 4
          %v1420 = vadd.f32 %v1418, %v1419
          %v1421 = vrot.slane %v1420, 2
          %v1422 = vadd.f32 %v1420, %v1421
          %v1423 = vrot.slane %v1422, 1
          %v1424 = vadd.f32 %v1422, %v1423
          %v1425 = vsel %vm1417, %v1416, 0.0
          %v1426 = vrot.slane %v1425, 4
          %v1427 = vadd.f32 %v1425, %v1426
          %v1428 = vrot.slane %v1427, 2
          %v1429 = vadd.f32 %v1427, %v1428
          %v1430 = vrot.slane %v1429, 1
          %v1431 = vadd.f32 %v1429, %v1430
          %v1432 = vxor.u32 %v1424, 2147483648
          %v1433 = vxor.u32 %v1431, 2147483648
          %v1434 = vmul.f32 %v1432, 1.442695
          %v1435 = vpow.pop %v1434
          %v1436 = vmul.f32 %v1433, 1.442695
          %v1437 = vpow.pop %v1436
          %v1438 = vadd.f32 %v1435, 1.0
          %v1439 = vadd.f32 %v1437, 1.0
          %v1440 = vrcp.pop %v1438
          %v1441 = vmul.f32 1.0, %v1440
          %v1442 = vrcp.pop %v1439
          %v1443 = vmul.f32 1.0, %v1442
          %v1446 = vcombine.low %v1441, %v1443
          %v1448 = vunpack.c.l.s4 1966171168
          %v1449 = vunpack.c.0.s8 %v1448
          %v1450 = vlaneseq
          %v1451 = vshrl.u32 %v1450, 7
          %v1452 = vsub.s32 %v1449, %v1451
          %v1453 = vrot.slane %v1446, %v1452
          %v1455 = vunpack.c.l.s4 1966171168
          %v1456 = vunpack.c.0.s8 %v1455
          %v1457 = vlaneseq
          %v1458 = vshrl.u32 %v1457, 7
          %v1459 = vsub.s32 %v1456, %v1458
          %v1460 = vrot.slane %v1453, %v1459
          %v1462 = vlaneseq
          %vm1463 = vcmp.ge.s32.totalorder %v1462, 0
          %vm1464 = vcmp.lt.s32.totalorder %v1462, 256
          %vm1465 = vmand %vm1463, %vm1464
          %1466 = vst.msk [vmem:[%s189] sm:$0x3] %vm1465, %v1460
        $region44: #{tpu_custom_call.1} parent=27 // pred_fallthru
          _
        %s1467 = sand.u32 %s89, 1
        %s1468 = scalar_lea.sflag [#allocation6], %s1467
        %s1469 = sand.u32 %s89, 1
        %s1470 = smul.addr %s1469, 2
        %s1471 = scalar_lea.vmem [#allocation9], %s1470
        // Predicated region
        $region45: #{tpu_custom_call.1} parent=27 // pred_check
          %p1472 = pneg %p99
        $region46: #{tpu_custom_call.1} parent=27 // pred_check_branch
          %1474 = sbr.rel (%p1472) target = $region48
        $region47: #{tpu_custom_call.1} parent=27 // pred_region
          %s1476 = ssub.s32 32, 32
          %1477 = vsyncadd %s1468, %s1476
          %s1478 = smul.addr %s24, 2
          %s1479 = smul.addr %s1478, 16
          %s1480 = scalar_lea.hbm %s2, %s1479
          %s1482 = sshll.u32 %s1471, 4
          %s1483 = int_to_ptr.vmem [resolvable:$true] %s1482
          %1485 = dma.vmem_to_hbm [thread:$0]  %s1483, 32, %s1480, %s1468
        $region48: #{tpu_custom_call.1} parent=27 // pred_fallthru
          _
      $region28: #{tpu_custom_call.1} parent=5 // pred_fallthru
        _
      %p1486 = scmp.le.s32.totalorder 2, %s15
      // Predicated region
      $region49: #{tpu_custom_call.1} parent=5 // pred_check
        %p1487 = pneg %p1486
      $region50: #{tpu_custom_call.1} parent=5 // pred_check_branch
        %1489 = sbr.rel (%p1487) target = $region52
      $region51: #{tpu_custom_call.1} parent=5 // pred_region
        %s1490 = ssub.s32 %s15, 2
        // Predicated region
        $region53: #{tpu_custom_call.1} parent=51 // pred_check
          %p1491 = pneg %p105
        $region54: #{tpu_custom_call.1} parent=51 // pred_check_branch
          %1493 = sbr.rel (%p1491) target = $region56
        $region55: #{tpu_custom_call.1} parent=51 // pred_region
          %s1494 = sand.u32 %s90, 1
          %s1495 = scalar_lea.sflag [#allocation6], %s1494
          %s1496 = sand.u32 %s90, 1
          %s1497 = smul.addr %s1496, 2
          %s1498 = scalar_lea.vmem [#allocation9], %s1497
          %1499 = dma.done %s1495, 32
        $region56: #{tpu_custom_call.1} parent=51 // pred_fallthru
          _
      $region52: #{tpu_custom_call.1} parent=5 // pred_fallthru
        _
    $region6: #{tpu_custom_call.1} parent=1 // loop_footer
      %s19 = sadd.s32 1, %s15
    $region7: #{tpu_custom_call.1} parent=1 // loop_footer_branch
      %14 = sbr.rel target = $region3
    $region8: #{tpu_custom_call.1} parent=1 // loop_exit
      _
    %1500 = vsyncpa [#allocation5], 1
    %s1501 = scalar_lea.sflag [#allocation5], 1
    %1502 = vsyncpa %s1501, 1
    %1503 = vsyncpa [#allocation6], 1
    %s1504 = scalar_lea.sflag [#allocation6], 1
    %1505 = vsyncpa %s1504, 1
    %1506 = vsyncpa [#allocation7], 1
    %s1507 = scalar_lea.sflag [#allocation7], 1
    %1508 = vsyncpa %s1507, 1

</llo_original>
